<compile_context>
chip_gen: v7x
topology: tpu7x:2x2x1
jax: 0.10.0
libtpu: 0.0.40
codegen_flags: <defaults>
</compile_context>

<pallas_src>
import functools

import jax
import jax.numpy as jnp
import numpy as np
from jax.experimental import pallas as pl
from jax.experimental.pallas import tpu as pltpu

HIDDEN = 512  # hard-coded hidden width of command_projector in the module
EPS = 1e-5    # InstanceNorm2d default eps


# --------------------------------------------------------------------------
# Kernels
# --------------------------------------------------------------------------
def _instance_norm_rows(y, inv_n):
    """Fused InstanceNorm over the lane (spatial) axis of a (C, N) f32 tile.

    Single sum / sum-of-squares pass, var = E[y^2] - mean^2 (guarded >= 0),
    one normalize pass.  ~3 full-tile VPU passes instead of ~5.
    """
    s1 = jnp.sum(y, axis=1, keepdims=True)            # (C, 1)
    s2 = jnp.sum(y * y, axis=1, keepdims=True)        # (C, 1)
    mean = s1 * inv_n
    var = jnp.maximum(s2 * inv_n - mean * mean, 0.0)  # guard tiny negative cancellation
    return (y - mean) * jax.lax.rsqrt(var + EPS)


def _folded_kernel(x_ref, wf_ref, out_ref, *, batch_block, inv_n):
    """Fast path: out = InstanceNorm(wf @ x).  The command/attention branch and
    both biases are per-channel constants that InstanceNorm removes exactly."""
    wf = wf_ref[...]                                   # (C, C), stream dtype
    for b in range(batch_block):                       # small static unroll (<= 8)
        proj = jnp.dot(wf, x_ref[b], preferred_element_type=jnp.float32)   # (C, N) f32
        out_ref[b] = _instance_norm_rows(proj, inv_n).astype(out_ref.dtype)


def _full_kernel(x_ref, cmd_ref, wf_ref, bf_ref,
                 w1_ref, b1_ref, w2_ref, b2_ref,
                 wv_ref, bv_ref, wo_ref, bo_ref,
                 out_ref, *, batch_block, inv_n):
    """Fidelity path: literally executes the module forward (command projector,
    length-1-key attention, residual, InstanceNorm), batched per grid step."""
    f32 = jnp.float32
    wf = wf_ref[...]                                                        # (C, C)

    # --- command_projector + attention, once per grid step as column matmuls ---
    cmd = cmd_ref[0]                                                        # (D, bb)
    h1 = jnp.dot(w1_ref[...], cmd, preferred_element_type=f32) + b1_ref[...]
    h1 = jnp.maximum(h1, 0.0)                                               # (512, bb)
    c = jnp.dot(w2_ref[...], h1, preferred_element_type=f32) + b2_ref[...]  # (C, bb)
    # multi-head attention with key = value = command of length 1: the per-head
    # softmax over a single key is identically 1 -> output is out_proj(v).
    v = jnp.dot(wv_ref[...], c, preferred_element_type=f32) + bv_ref[...]   # (C, bb)
    attn = jnp.dot(wo_ref[...], v, preferred_element_type=f32) + bo_ref[...]
    col = attn + bf_ref[...]        # fold the 1x1-conv bias into the same column

    for b in range(batch_block):                       # small static unroll (<= 8)
        proj = jnp.dot(wf, x_ref[b], preferred_element_type=f32)            # (C, N)
        y = proj + col[:, b:b + 1]                     # residual (per-channel column)
        out_ref[b] = _instance_norm_rows(y, inv_n).astype(out_ref.dtype)


# --------------------------------------------------------------------------
# Wrapper
# --------------------------------------------------------------------------
def _vmem_capacity_bytes():
    try:
        return int(pltpu.get_tpu_info().vmem_capacity_bytes)
    except Exception:
        return 64 << 20   # conservative (v7x per-TensorCore) fallback


def _const_spec(shape, single_buffer=True):
    """Grid-invariant operand (weight/bias): resident in VMEM and, when the
    installed Pallas supports it, single-buffered instead of double-buffered."""
    index_map = lambda g: (0,) * len(shape)
    if single_buffer and hasattr(pl, "Buffered"):
        try:
            return pl.BlockSpec(shape, index_map, pipeline_mode=pl.Buffered(1))
        except (TypeError, ValueError):
            pass
    return pl.BlockSpec(shape, index_map)


def _pick_batch_block(B, per_block_bytes, resident_bytes, usable_bytes, max_unroll=8):
    """Largest divisor of B (capped at `max_unroll` to bound the static unroll)
    whose pipelined feature blocks + resident weights fit the VMEM budget,
    keeping >= 2 grid steps when possible so both v7x TensorCores get work."""
    headroom = 4 << 20
    avail = usable_bytes - resident_bytes - headroom
    max_bb = max(1, min(max_unroll, avail // per_block_bytes))
    bb = 1
    for cand in range(min(B, int(max_bb)), 0, -1):
        if B % cand == 0:
            bb = cand
            break
    if B >= 2 and B // bb < 2:
        for cand in range(bb - 1, 0, -1):
            if B % cand == 0:
                bb = cand
                break
    return bb


def multihead_attention_combiner(features_nchw, command, params, *,
                                 n_heads=4, batch_block=None,
                                 fold_constant_branch=True):
    """features_nchw: (B, C, H, W), command: (B, D).

    If features are bf16, the big (B, C, N) streams and the 1x1-conv matmul
    operands stay bf16 (f32 accumulation / statistics); output dtype follows
    the feature dtype.
    """
    B, C, H, W = features_nchw.shape
    N = H * W
    D = command.shape[-1]
    assert C % n_heads == 0, "features_channels must be divisible by n_heads"
    # n_heads only partitions channels; with a length-1 key the per-head softmax
    # is 1, so the head count cannot affect the output.
    del n_heads

    x_dtype = features_nchw.dtype
    itemsize = jnp.dtype(x_dtype).itemsize
    x_cn = features_nchw.reshape(B, C, N)          # NCHW-contiguous, no HBM transpose
    wf = params["wf"].astype(x_dtype)              # stream dtype for the 1x1 conv

    # --- generation-aware VMEM budget (v7x: 64 MiB/TC, v5e/v6e: 128 MiB) -------
    usable = int(_vmem_capacity_bytes() * 0.80)    # headroom for compiler scratch

    resident = wf.size * itemsize                  # single-buffered weights
    if not fold_constant_branch:
        resident += 4 * sum(int(params[k].size) for k in
                            ("bf", "w1", "b1", "w2", "b2", "wv", "bv", "wo", "bo"))
        resident += 2 * 4 * D * 128                # pipelined (D, bb) command block (lane-padded)

    per_block = 4 * C * N * itemsize               # 2 in + 2 out pipeline buffers / batch elem
    if batch_block is None:
        batch_block = _pick_batch_block(B, per_block, resident, usable)
    assert B % batch_block == 0, "batch_block must divide the batch size"
    grid = (B // batch_block,)

    need = batch_block * per_block + resident + (4 << 20)
    vmem_limit = int(min(max(need, 16 << 20), usable))
    # TODO(synk): feature maps too large for batch_block=1 need an N-tiled grid
    # axis with a two-pass (running sum / sum-of-squares) InstanceNorm.
    # NOTE: keep N = H*W a multiple of 128 for unmasked lane-dense output stores;
    # for very small maps a tokens-major (B, N, C) layout would be preferable.

    feat_spec = pl.BlockSpec((batch_block, C, N), lambda g: (g, 0, 0))
    out_spec = pl.BlockSpec((batch_block, C, N), lambda g: (g, 0, 0))
    cp = pltpu.CompilerParams(dimension_semantics=("parallel",),
                              vmem_limit_bytes=vmem_limit)

    if not fold_constant_branch:
        # command as (G, D, bb): each grid step gets its own column block, with
        # D on sublanes and the block batch on lanes (no per-element lane padding).
        cmd_gdb = command.astype(jnp.float32).reshape(grid[0], batch_block, D) \
                         .transpose(0, 2, 1)

    def _launch(single_buffer_weights):
        def const(shape):
            return _const_spec(shape, single_buffer_weights)

        if fold_constant_branch:
            kernel = functools.partial(_folded_kernel,
                                       batch_block=batch_block, inv_n=1.0 / N)
            in_specs = [feat_spec, const((C, C))]
            operands = (x_cn, wf)
        else:
            kernel = functools.partial(_full_kernel,
                                       batch_block=batch_block, inv_n=1.0 / N)
            in_specs = [feat_spec,
                        pl.BlockSpec((1, D, batch_block), lambda g: (g, 0, 0)),
                        const((C, C)), const((C, 1)),            # features_projector
                        const((HIDDEN, D)), const((HIDDEN, 1)),  # command_projector L1
                        const((C, HIDDEN)), const((C, 1)),       # command_projector L2
                        const((C, C)), const((C, 1)),            # attention v in-proj
                        const((C, C)), const((C, 1))]            # attention out-proj
            operands = (x_cn, cmd_gdb, wf,
                        params["bf"], params["w1"], params["b1"],
                        params["w2"], params["b2"],
                        params["wv"], params["bv"], params["wo"], params["bo"])

        return pl.pallas_call(
            kernel,
            out_shape=jax.ShapeDtypeStruct((B, C, N), x_dtype),
            grid=grid,
            in_specs=in_specs,
            out_specs=out_spec,
            compiler_params=cp,
        )(*operands)

    try:
        out_cn = _launch(True)
    except Exception:
        # Fallback for Pallas versions that reject single-buffered
        # (pipeline_mode=Buffered(1)) grid-invariant operands.
        out_cn = _launch(False)

    return out_cn.reshape(B, C, H, W)


# --------------------------------------------------------------------------
# Parameters & pure-JAX reference
# --------------------------------------------------------------------------
def init_params(key, command_dim, channels, scale=0.05):
    """Weights in native PyTorch (out, in) layout, biases as (out, 1) columns.
    The MHA q/k in-projection weights are omitted: with key length 1 the softmax
    is identically 1, so they provably cannot affect the output."""
    ks = jax.random.split(key, 10)
    n = lambda k, s: jax.random.normal(k, s, jnp.float32) * scale
    return dict(
        wf=n(ks[0], (channels, channels)), bf=n(ks[1], (channels, 1)),
        w1=n(ks[2], (HIDDEN, command_dim)), b1=n(ks[3], (HIDDEN, 1)),
        w2=n(ks[4], (channels, HIDDEN)), b2=n(ks[5], (channels, 1)),
        wv=n(ks[6], (channels, channels)), bv=n(ks[7], (channels, 1)),
        wo=n(ks[8], (channels, channels)), bo=n(ks[9], (channels, 1)),
    )


def reference(features_nchw, command, params):
    """Pure-JAX reference of the full forward pass (all branches executed)."""
    B, C, H, W = features_nchw.shape
    x = features_nchw.reshape(B, C, H * W)                               # (B, C, N)
    proj = jnp.einsum('oc,bcn->bon', params["wf"], x) + params["bf"][None]
    h1 = jax.nn.relu(command @ params["w1"].T + params["b1"][:, 0])
    c = h1 @ params["w2"].T + params["b2"][:, 0]                         # (B, C)
    v = c @ params["wv"].T + params["bv"][:, 0]                          # (B, C)
    # key sequence length is 1 -> softmax weights are exactly 1 for every head
    attn = v @ params["wo"].T + params["bo"][:, 0]                       # (B, C)
    y = proj + attn[:, :, None]
    mean = y.mean(axis=2, keepdims=True)
    var = ((y - mean) ** 2).mean(axis=2, keepdims=True)
    out = (y - mean) / jnp.sqrt(var + EPS)
    return out.reshape(B, C, H, W)


# --------------------------------------------------------------------------
# Demo / self-test
# --------------------------------------------------------------------------
if __name__ == "__main__":
    # Small shapes consistent with the module: C divisible by n_heads, and
    # N = H*W = 256 (multiple of 128 -> lane-dense output stores).
    B, C, H, W = 2, 128, 16, 16
    D = 256          # command_dim (module default is 768; shrunk for the demo)
    n_heads = 4

    key = jax.random.PRNGKey(0)
    kf, kc, kp = jax.random.split(key, 3)
    features = jax.random.normal(kf, (B, C, H, W), jnp.float32)
    command = jax.random.normal(kc, (B, D), jnp.float32)
    params = init_params(kp, D, C)

    ref = reference(features, command, params)

    # Fast path: command/attention branch folded away (cancelled by InstanceNorm).
    out_fold = multihead_attention_combiner(features, command, params,
                                            n_heads=n_heads,
                                            fold_constant_branch=True)
    out_fold = jax.block_until_ready(out_fold)
    assert out_fold.shape == (B, C, H, W)
    np.testing.assert_allclose(np.asarray(out_fold), np.asarray(ref),
                               rtol=2e-2, atol=2e-2)

    # Fidelity path: literally executes the command/attention branch (batched).
    out_full = multihead_attention_combiner(features, command, params,
                                            n_heads=n_heads,
                                            fold_constant_branch=False)
    out_full = jax.block_until_ready(out_full)
    np.testing.assert_allclose(np.asarray(out_full), np.asarray(ref),
                               rtol=2e-2, atol=2e-2)

    # bf16 streaming path (f32 accumulation + statistics): halves HBM traffic.
    out_bf16 = multihead_attention_combiner(features.astype(jnp.bfloat16), command,
                                            params, n_heads=n_heads,
                                            fold_constant_branch=True)
    out_bf16 = jax.block_until_ready(out_bf16)
    assert out_bf16.shape == (B, C, H, W) and out_bf16.dtype == jnp.bfloat16
    assert bool(jnp.all(jnp.isfinite(out_bf16.astype(jnp.float32))))

    print("KERNEL_OK")
</pallas_src>

<mosaic_0001>
module attributes {stable_mosaic.version = 11 : i64} {
  func.func @_folded_kernel(%arg0: i32, %arg1: memref<1x128x256xf32, #tpu.memory_space<vmem>>, %arg2: memref<128x128xf32, #tpu.memory_space<vmem>>, %arg3: memref<1x128x256xf32, #tpu.memory_space<vmem>>) attributes {dimension_semantics = [#tpu.dimension_semantics<parallel>], iteration_bounds = array<i64: 2>, scalar_prefetch = 0 : i64, scratch_operands = 0 : i64, tpu.core_type = #tpu.core_type<tc>, window_params = [{transform_indices = @transform_0, window_bounds = array<i64: 1, 128, 256>}, {pipeline_mode = #tpu.pipeline_mode<synchronous>, transform_indices = @transform_1, window_bounds = array<i64: 128, 128>}, {transform_indices = @transform_2, window_bounds = array<i64: 1, 128, 256>}]} {
    %c0 = arith.constant 0 : index
    %c0_0 = arith.constant 0 : index
    %0 = vector.load %arg2[%c0, %c0_0] : memref<128x128xf32, #tpu.memory_space<vmem>>, vector<128x128xf32>
    %c0_1 = arith.constant 0 : index
    %c0_2 = arith.constant 0 : index
    %c0_3 = arith.constant 0 : index
    %1 = vector.load %arg1[%c0_1, %c0_2, %c0_3] : memref<1x128x256xf32, #tpu.memory_space<vmem>>, vector<1x128x256xf32>
    %2 = vector.shape_cast %1 : vector<1x128x256xf32> to vector<128x256xf32>
    %cst = arith.constant dense<0.000000e+00> : vector<128x256xf32>
    %3 = tpu.matmul %0, %2, %cst {dimension_numbers = #tpu.dot_dimension_numbers<[1], [0], [0], [1], [0, 0, 1, 1], [], []>} : vector<128x128xf32>, vector<128x256xf32>, vector<128x256xf32> -> vector<128x256xf32>
    %cst_4 = arith.constant dense<0.000000e+00> : vector<128xf32>
    %4 = vector.multi_reduction <add>, %3, %cst_4 [1] : vector<128x256xf32> to vector<128xf32>
    %5 = vector.shape_cast %4 : vector<128xf32> to vector<128x1xf32>
    %6 = arith.mulf %3, %3 : vector<128x256xf32>
    %cst_5 = arith.constant dense<0.000000e+00> : vector<128xf32>
    %7 = vector.multi_reduction <add>, %6, %cst_5 [1] : vector<128x256xf32> to vector<128xf32>
    %8 = vector.shape_cast %7 : vector<128xf32> to vector<128x1xf32>
    %cst_6 = arith.constant 3.906250e-03 : f32
    %9 = vector.broadcast %cst_6 : f32 to vector<128x1xf32>
    %10 = arith.mulf %5, %9 : vector<128x1xf32>
    %cst_7 = arith.constant 3.906250e-03 : f32
    %11 = vector.broadcast %cst_7 : f32 to vector<128x1xf32>
    %12 = arith.mulf %8, %11 : vector<128x1xf32>
    %13 = arith.mulf %10, %10 : vector<128x1xf32>
    %14 = arith.subf %12, %13 : vector<128x1xf32>
    %cst_8 = arith.constant 0.000000e+00 : f32
    %15 = vector.broadcast %cst_8 : f32 to vector<128x1xf32>
    %16 = arith.maximumf %14, %15 : vector<128x1xf32>
    %17 = vector.broadcast %10 : vector<128x1xf32> to vector<128x256xf32>
    %18 = arith.subf %3, %17 : vector<128x256xf32>
    %cst_9 = arith.constant 9.99999974E-6 : f32
    %19 = vector.broadcast %cst_9 : f32 to vector<128x1xf32>
    %20 = arith.addf %16, %19 : vector<128x1xf32>
    %21 = math.rsqrt %20 : vector<128x1xf32>
    %22 = vector.broadcast %21 : vector<128x1xf32> to vector<128x256xf32>
    %23 = arith.mulf %18, %22 : vector<128x256xf32>
    %c0_10 = arith.constant 0 : index
    %c0_11 = arith.constant 0 : index
    %c0_12 = arith.constant 0 : index
    %24 = vector.load %arg3[%c0_10, %c0_11, %c0_12] : memref<1x128x256xf32, #tpu.memory_space<vmem>>, vector<1x128x256xf32>
    %25 = vector.shape_cast %24 : vector<1x128x256xf32> to vector<128x256xf32>
    %26 = vector.shape_cast %23 : vector<128x256xf32> to vector<1x128x256xf32>
    tpu.vector_store %arg3[%c0_10, %c0_11, %c0_12], %26 {strides = array<i32>} : memref<1x128x256xf32, #tpu.memory_space<vmem>>, vector<1x128x256xf32>,
    return
  }
  func.func @transform_0(%arg0: i32) -> (i32, i32, i32) {
    %c0_i32 = arith.constant 0 : i32
    %c0_i32_0 = arith.constant 0 : i32
    %c0_i32_1 = arith.constant 0 : i32
    return %arg0, %c0_i32, %c0_i32_0 : i32, i32, i32
  }
  func.func @transform_1(%arg0: i32) -> (i32, i32) {
    %c0_i32 = arith.constant 0 : i32
    %c0_i32_0 = arith.constant 0 : i32
    %c0_i32_1 = arith.constant 0 : i32
    return %c0_i32, %c0_i32_0 : i32, i32
  }
  func.func @transform_2(%arg0: i32) -> (i32, i32, i32) {
    %c0_i32 = arith.constant 0 : i32
    %c0_i32_0 = arith.constant 0 : i32
    %c0_i32_1 = arith.constant 0 : i32
    return %arg0, %c0_i32, %c0_i32_0 : i32, i32, i32
  }
}

module attributes {stable_mosaic.version = 11 : i64} {
  func.func @_folded_kernel(%arg0: i32, %arg1: memref<1x128x256xf32, #tpu.memory_space<vmem>>, %arg2: memref<128x128xf32, #tpu.memory_space<vmem>>, %arg3: memref<1x128x256xf32, #tpu.memory_space<vmem>>) attributes {dimension_semantics = [#tpu.dimension_semantics<parallel>], iteration_bounds = array<i64: 2>, scalar_prefetch = 0 : i64, scratch_operands = 0 : i64, tpu.core_type = #tpu.core_type<tc>, window_params = [{transform_indices = @transform_0, window_bounds = array<i64: 1, 128, 256>}, {pipeline_mode = #tpu.pipeline_mode<synchronous>, transform_indices = @transform_1, window_bounds = array<i64: 128, 128>}, {transform_indices = @transform_2, window_bounds = array<i64: 1, 128, 256>}]} {
    %c0 = arith.constant 0 : index
    %c0_0 = arith.constant 0 : index
    %0 = vector.load %arg2[%c0, %c0_0] : memref<128x128xf32, #tpu.memory_space<vmem>>, vector<128x128xf32>
    %c0_1 = arith.constant 0 : index
    %c0_2 = arith.constant 0 : index
    %c0_3 = arith.constant 0 : index
    %1 = vector.load %arg1[%c0_1, %c0_2, %c0_3] : memref<1x128x256xf32, #tpu.memory_space<vmem>>, vector<1x128x256xf32>
    %2 = vector.shape_cast %1 : vector<1x128x256xf32> to vector<128x256xf32>
    %cst = arith.constant dense<0.000000e+00> : vector<128x256xf32>
    %3 = tpu.matmul %0, %2, %cst {dimension_numbers = #tpu.dot_dimension_numbers<[1], [0], [0], [1], [0, 0, 1, 1], [], []>} : vector<128x128xf32>, vector<128x256xf32>, vector<128x256xf32> -> vector<128x256xf32>
    %cst_4 = arith.constant dense<0.000000e+00> : vector<128xf32>
    %4 = vector.multi_reduction <add>, %3, %cst_4 [1] : vector<128x256xf32> to vector<128xf32>
    %5 = vector.shape_cast %4 : vector<128xf32> to vector<128x1xf32>
    %6 = arith.mulf %3, %3 : vector<128x256xf32>
    %cst_5 = arith.constant dense<0.000000e+00> : vector<128xf32>
    %7 = vector.multi_reduction <add>, %6, %cst_5 [1] : vector<128x256xf32> to vector<128xf32>
    %8 = vector.shape_cast %7 : vector<128xf32> to vector<128x1xf32>
    %cst_6 = arith.constant 3.906250e-03 : f32
    %9 = vector.broadcast %cst_6 : f32 to vector<128x1xf32>
    %10 = arith.mulf %5, %9 : vector<128x1xf32>
    %cst_7 = arith.constant 3.906250e-03 : f32
    %11 = vector.broadcast %cst_7 : f32 to vector<128x1xf32>
    %12 = arith.mulf %8, %11 : vector<128x1xf32>
    %13 = arith.mulf %10, %10 : vector<128x1xf32>
    %14 = arith.subf %12, %13 : vector<128x1xf32>
    %cst_8 = arith.constant 0.000000e+00 : f32
    %15 = vector.broadcast %cst_8 : f32 to vector<128x1xf32>
    %16 = arith.maximumf %14, %15 : vector<128x1xf32>
    %17 = vector.broadcast %10 : vector<128x1xf32> to vector<128x256xf32>
    %18 = arith.subf %3, %17 : vector<128x256xf32>
    %cst_9 = arith.constant 9.99999974E-6 : f32
    %19 = vector.broadcast %cst_9 : f32 to vector<128x1xf32>
    %20 = arith.addf %16, %19 : vector<128x1xf32>
    %21 = math.rsqrt %20 : vector<128x1xf32>
    %22 = vector.broadcast %21 : vector<128x1xf32> to vector<128x256xf32>
    %23 = arith.mulf %18, %22 : vector<128x256xf32>
    %c0_10 = arith.constant 0 : index
    %c0_11 = arith.constant 0 : index
    %c0_12 = arith.constant 0 : index
    %24 = vector.load %arg3[%c0_10, %c0_11, %c0_12] : memref<1x128x256xf32, #tpu.memory_space<vmem>>, vector<1x128x256xf32>
    %25 = vector.shape_cast %24 : vector<1x128x256xf32> to vector<128x256xf32>
    %26 = vector.shape_cast %23 : vector<128x256xf32> to vector<1x128x256xf32>
    tpu.vector_store %arg3[%c0_10, %c0_11, %c0_12], %26 {strides = array<i32>} : memref<1x128x256xf32, #tpu.memory_space<vmem>>, vector<1x128x256xf32>,
    return
  }
  func.func @transform_0(%arg0: i32) -> (i32, i32, i32) {
    %c0_i32 = arith.constant 0 : i32
    %c0_i32_0 = arith.constant 0 : i32
    %c0_i32_1 = arith.constant 0 : i32
    return %arg0, %c0_i32, %c0_i32_0 : i32, i32, i32
  }
  func.func @transform_1(%arg0: i32) -> (i32, i32) {
    %c0_i32 = arith.constant 0 : i32
    %c0_i32_0 = arith.constant 0 : i32
    %c0_i32_1 = arith.constant 0 : i32
    return %c0_i32, %c0_i32_0 : i32, i32
  }
  func.func @transform_2(%arg0: i32) -> (i32, i32, i32) {
    %c0_i32 = arith.constant 0 : i32
    %c0_i32_0 = arith.constant 0 : i32
    %c0_i32_1 = arith.constant 0 : i32
    return %arg0, %c0_i32, %c0_i32_0 : i32, i32, i32
  }
}

</mosaic_0001>

<llo_original>
// kernel: tpu_custom_call.1
$region0: #{tpu_custom_call.1}
  #allocation0 [shape = 'u32[]', space=smem, size = 0x4, offset = 0x4, fixed_abs, tag = 'smem constant byte address 0x4 - core index']
  #allocation1 [shape = 'u32[144,128]{1,0:T(1,128)}', space=vmem, size = 0x12000, scoped, tag = 'internal scratch']
  %s0 = inlined_call_operand.hbm [shape: f32[2,128,256], index: 0, kind: input, shape index: {}]
  %s1 = inlined_call_operand.hbm [shape: f32[128,128], index: 1, kind: input, shape index: {}]
  %s2 = inlined_call_operand.hbm [shape: f32[2,128,256], index: 2, kind: output, shape index: {}]
  %s3 = sld [smem:[#allocation0]]
  $region49: #{tpu_custom_call.1} parent=0
    _
  %s5 = ssub.s32 1, %s3
  %s6 = scalar_select 0, %s5, %s3
  $region1: #{tpu_custom_call.1} parent=0
    #allocation2 [shape = 'u8[262144]{0}', space=vmem, size = 0x40000, scoped, tag = 'input window, operand 0']
    #allocation3 [shape = 's32[2]{0}', space=sflag, size = 0x8, scoped, tag = 'scoped memory for tpu_custom_call.1']
    #allocation4 [shape = 's32[2]{0}', space=sflag, size = 0x8, scoped, tag = 'scoped memory for tpu_custom_call.1']
    #allocation5 [shape = 'u8[65536]{0}', space=vmem, size = 0x10000, scoped, tag = 'input window, operand 1, single buffered']
    #allocation6 [shape = 's32[1]{0}', space=sflag, size = 0x4, scoped, tag = 'scoped memory for tpu_custom_call.1']
    #allocation7 [shape = 'u8[262144]{0}', space=vmem, size = 0x40000, scoped, tag = 'output window, operand 0']
    %7 = vsyncpa [#allocation3], 0
    %s8 = scalar_lea.sflag [#allocation3], 1
    %9 = vsyncpa %s8, 0
    %10 = vsyncpa [#allocation6], 0
    %11 = vsyncpa [#allocation4], 0
    %s12 = scalar_lea.sflag [#allocation4], 1
    %13 = vsyncpa %s12, 0
    loop: start=0, step=1, limit=4
    $region2: #{tpu_custom_call.1} parent=1 // loop_pre_header
      _
    $region3: #{tpu_custom_call.1} parent=1 // loop_header
      %s15 = sphi 0, %s19
      %p16 = scmp.ge.s32.totalorder %s15, 4
      %s25 = sphi 0, %s27
      %s28 = sphi 0, %s25
      %s29 = sphi 0, %s28
      %s45 = sphi 0, %s29
      %s49 = sphi 0, %s49
      %s51 = sphi 0, %s49
      %s52 = sphi 0, %s51
      %s66 = sphi 0, %s52
      %s72 = sphi 0, %s74
      %s75 = sphi 0, %s72
      %s76 = sphi 0, %s75
      %s92 = sphi 0, %s76
    $region4: #{tpu_custom_call.1} parent=1 // loop_header_branch
      %18 = sbr.rel (%p16) target = $region8
    $region5: #{tpu_custom_call.1} parent=1 // loop_body
      %s20 = ssub.s32 %s15, 1
      %s21 = ssub.s32 %s15, 2
      %s22 = sadd.s32 %s15, 1
      %s23 = ssub.s32 %s15, %s22
      %p24 = scmp.eq.s32.totalorder %s23, 0
      %s26 = sadd.s32 %s25, 1
      %s27 = scalar_select %p24, %s25, %s26
      %p30 = pneg %p24
      %p31 = scmp.eq.s32.totalorder %s15, 1
      %p32 = por %p30, %p31
      %p33 = scmp.ne.s32.totalorder %s25, %s28
      %p34 = scmp.eq.s32.totalorder %s15, 0
      %p35 = por %p33, %p34
      %p36 = scmp.ne.s32.totalorder %s25, %s28
      %p37 = scmp.eq.s32.totalorder %s20, 1
      %p38 = por %p36, %p37
      %p39 = scmp.ne.s32.totalorder %s28, %s29
      %p40 = scmp.eq.s32.totalorder %s20, 0
      %p41 = por %p39, %p40
      %p42 = scmp.ne.s32.totalorder %s28, %s29
      %p43 = scmp.eq.s32.totalorder %s21, 1
      %p44 = por %p42, %p43
      %p46 = scmp.ne.s32.totalorder %s29, %s45
      %p47 = scmp.eq.s32.totalorder %s21, 0
      %p48 = por %p46, %p47
      %s50 = sadd.s32 %s49, 1
      %p53 = scmp.eq.s32.totalorder %s15, 1
      %p54 = scmp.ne.s32.totalorder %s49, %s51
      %p55 = scmp.eq.s32.totalorder %s15, 0
      %p56 = por %p54, %p55
      %p57 = scmp.ne.s32.totalorder %s49, %s51
      %p58 = scmp.eq.s32.totalorder %s20, 1
      %p59 = por %p57, %p58
      %p60 = scmp.ne.s32.totalorder %s51, %s52
      %p61 = scmp.eq.s32.totalorder %s20, 0
      %p62 = por %p60, %p61
      %p63 = scmp.ne.s32.totalorder %s51, %s52
      %p64 = scmp.eq.s32.totalorder %s21, 1
      %p65 = por %p63, %p64
      %p67 = scmp.ne.s32.totalorder %s52, %s66
      %p68 = scmp.eq.s32.totalorder %s21, 0
      %p69 = por %p67, %p68
      %s70 = ssub.s32 %s15, %s22
      %p71 = scmp.eq.s32.totalorder %s70, 0
      %s73 = sadd.s32 %s72, 1
      %s74 = scalar_select %p71, %s72, %s73
      %p77 = pneg %p71
      %p78 = scmp.eq.s32.totalorder %s15, 1
      %p79 = por %p77, %p78
      %p80 = scmp.ne.s32.totalorder %s72, %s75
      %p81 = scmp.eq.s32.totalorder %s15, 0
      %p82 = por %p80, %p81
      %p83 = scmp.ne.s32.totalorder %s72, %s75
      %p84 = scmp.eq.s32.totalorder %s20, 1
      %p85 = por %p83, %p84
      %p86 = scmp.ne.s32.totalorder %s75, %s76
      %p87 = scmp.eq.s32.totalorder %s20, 0
      %p88 = por %p86, %p87
      %p89 = scmp.ne.s32.totalorder %s75, %s76
      %p90 = scmp.eq.s32.totalorder %s21, 1
      %p91 = por %p89, %p90
      %p93 = scmp.ne.s32.totalorder %s76, %s92
      %p94 = scmp.eq.s32.totalorder %s21, 0
      %p95 = por %p93, %p94
      %p96 = scmp.le.s32.totalorder 1, %s15
      %p97 = scmp.lt.s32.totalorder %s15, 3
      %p98 = pnand %p96, %p97
      %p99 = pneg %p98
      // Predicated region
      $region9: #{tpu_custom_call.1} parent=5 // pred_check
        _
      $region10: #{tpu_custom_call.1} parent=5 // pred_check_branch
        %101 = sbr.rel (%p98) target = $region12
      $region11: #{tpu_custom_call.1} parent=5 // pred_region
        %s102 = ssub.s32 %s15, 1
        // Predicated region
        $region13: #{tpu_custom_call.1} parent=11 // pred_check
          %p103 = pneg %p62
        $region14: #{tpu_custom_call.1} parent=11 // pred_check_branch
          %105 = sbr.rel (%p103) target = $region16
        $region15: #{tpu_custom_call.1} parent=11 // pred_region
          %s107 = ssub.s32 2048, 2048
          %108 = vsyncadd [#allocation6], %s107
          %s109 = sshll.u32 [#allocation5], 4
          %s110 = int_to_ptr.vmem [resolvable:$true] %s109
          %115 = dma.hbm_to_vmem [thread:$0]  %s1, 2048, %s110, [#allocation6], 128, 128, 8
        $region16: #{tpu_custom_call.1} parent=11 // pred_fallthru
          _
      $region12: #{tpu_custom_call.1} parent=5 // pred_fallthru
        _
      %p116 = scmp.lt.s32.totalorder %s15, 2
      // Predicated region
      $region17: #{tpu_custom_call.1} parent=5 // pred_check
        %p117 = pneg %p116
      $region18: #{tpu_custom_call.1} parent=5 // pred_check_branch
        %119 = sbr.rel (%p117) target = $region20
      $region19: #{tpu_custom_call.1} parent=5 // pred_region
        // Predicated region
        $region21: #{tpu_custom_call.1} parent=19 // pred_check
          %p120 = pneg %p35
        $region22: #{tpu_custom_call.1} parent=19 // pred_check_branch
          %122 = sbr.rel (%p120) target = $region24
        $region23: #{tpu_custom_call.1} parent=19 // pred_region
          %s123 = sand.u32 %s25, 1
          %s124 = scalar_lea.sflag [#allocation3], %s123
          %s125 = sand.u32 %s25, 1
          %s126 = smul.addr %s125, 256
          %s127 = scalar_lea.vmem [#allocation2], %s126
          %s129 = ssub.s32 4096, 4096
          %130 = vsyncadd %s124, %s129
          %s131 = smul.addr %s15, 32
          %s132 = smul.addr %s131, 128
          %s133 = scalar_lea.hbm %s0, %s132
          %s134 = sshll.u32 %s127, 4
          %s135 = int_to_ptr.vmem [resolvable:$true] %s134
          %140 = dma.hbm_to_vmem [thread:$0]  %s133, 4096, %s135, %s124, 256, 256, 16
        $region24: #{tpu_custom_call.1} parent=19 // pred_fallthru
          _
      $region20: #{tpu_custom_call.1} parent=5 // pred_fallthru
        _
      %p141 = scmp.le.s32.totalorder 1, %s15
      %p142 = scmp.lt.s32.totalorder %s15, 3
      %p143 = pnand %p141, %p142
      %p144 = pneg %p143
      // Predicated region
      $region25: #{tpu_custom_call.1} parent=5 // pred_check
        _
      $region26: #{tpu_custom_call.1} parent=5 // pred_check_branch
        %146 = sbr.rel (%p143) target = $region28
      $region27: #{tpu_custom_call.1} parent=5 // pred_region
        %s147 = ssub.s32 %s15, 1
        %s148 = sand.u32 %s28, 1
        %s149 = scalar_lea.sflag [#allocation3], %s148
        %s150 = sand.u32 %s28, 1
        %s151 = smul.addr %s150, 256
        %s152 = scalar_lea.vmem [#allocation2], %s151
        // Predicated region
        $region29: #{tpu_custom_call.1} parent=27 // pred_check
          %p153 = pneg %p41
        $region30: #{tpu_custom_call.1} parent=27 // pred_check_branch
          %155 = sbr.rel (%p153) target = $region32
        $region31: #{tpu_custom_call.1} parent=27 // pred_region
          %156 = dma.done %s149, 4096
        $region32: #{tpu_custom_call.1} parent=27 // pred_fallthru
          _
        // Predicated region
        $region33: #{tpu_custom_call.1} parent=27 // pred_check
          %p157 = pneg %p62
        $region34: #{tpu_custom_call.1} parent=27 // pred_check_branch
          %159 = sbr.rel (%p157) target = $region36
        $region35: #{tpu_custom_call.1} parent=27 // pred_region
          %160 = dma.done [#allocation6], 2048
        $region36: #{tpu_custom_call.1} parent=27 // pred_fallthru
          _
        %s161 = sand.u32 %s28, 1
        %s162 = scalar_lea.sflag [#allocation3], %s161
        %s163 = sand.u32 %s28, 1
        %s164 = smul.addr %s163, 256
        %s165 = scalar_lea.vmem [#allocation2], %s164
        %p166 = pneg %p41
        %p167 = pneg %p38
        %p168 = pneg %p62
        %p169 = pneg %p59
        %p170 = pneg %p88
        %p171 = pneg %p85
        %s172 = sand.u32 %s75, 1
        %s173 = scalar_lea.sflag [#allocation4], %s172
        %s174 = sand.u32 %s75, 1
        %s175 = smul.addr %s174, 256
        %s176 = scalar_lea.vmem [#allocation7], %s175
        %v177 = vld [vmem:[#allocation5] sm:$0xff]
        %v178 = vld [vmem:[#allocation5 + $0x8] sm:$0xff]
        %v179 = vld [vmem:[#allocation5 + $0x10] sm:$0xff]
        %v180 = vld [vmem:[#allocation5 + $0x18] sm:$0xff]
        %v181 = vld [vmem:[#allocation5 + $0x20] sm:$0xff]
        %v182 = vld [vmem:[#allocation5 + $0x28] sm:$0xff]
        %v183 = vld [vmem:[#allocation5 + $0x30] sm:$0xff]
        %v184 = vld [vmem:[#allocation5 + $0x38] sm:$0xff]
        %v185 = vld [vmem:[#allocation5 + $0x40] sm:$0xff]
        %v186 = vld [vmem:[#allocation5 + $0x48] sm:$0xff]
        %v187 = vld [vmem:[#allocation5 + $0x50] sm:$0xff]
        %v188 = vld [vmem:[#allocation5 + $0x58] sm:$0xff]
        %v189 = vld [vmem:[#allocation5 + $0x60] sm:$0xff]
        %v190 = vld [vmem:[#allocation5 + $0x68] sm:$0xff]
        %v191 = vld [vmem:[#allocation5 + $0x70] sm:$0xff]
        %v192 = vld [vmem:[#allocation5 + $0x78] sm:$0xff]
        %v193 = vld [vmem:[%s152] sm:$0xff]
        %v194 = vld [vmem:[%s152 + $0x8] sm:$0xff]
        %v195 = vld [vmem:[%s152 + $0x10] sm:$0xff]
        %v196 = vld [vmem:[%s152 + $0x18] sm:$0xff]
        %v197 = vld [vmem:[%s152 + $0x20] sm:$0xff]
        %v198 = vld [vmem:[%s152 + $0x28] sm:$0xff]
        %v199 = vld [vmem:[%s152 + $0x30] sm:$0xff]
        %v200 = vld [vmem:[%s152 + $0x38] sm:$0xff]
        %v201 = vld [vmem:[%s152 + $0x40] sm:$0xff]
        %v202 = vld [vmem:[%s152 + $0x48] sm:$0xff]
        %v203 = vld [vmem:[%s152 + $0x50] sm:$0xff]
        %v204 = vld [vmem:[%s152 + $0x58] sm:$0xff]
        %v205 = vld [vmem:[%s152 + $0x60] sm:$0xff]
        %v206 = vld [vmem:[%s152 + $0x68] sm:$0xff]
        %v207 = vld [vmem:[%s152 + $0x70] sm:$0xff]
        %v208 = vld [vmem:[%s152 + $0x78] sm:$0xff]
        %v209 = vld [vmem:[%s152 + $0x80] sm:$0xff]
        %v210 = vld [vmem:[%s152 + $0x88] sm:$0xff]
        %v211 = vld [vmem:[%s152 + $0x90] sm:$0xff]
        %v212 = vld [vmem:[%s152 + $0x98] sm:$0xff]
        %v213 = vld [vmem:[%s152 + $0xa0] sm:$0xff]
        %v214 = vld [vmem:[%s152 + $0xa8] sm:$0xff]
        %v215 = vld [vmem:[%s152 + $0xb0] sm:$0xff]
        %v216 = vld [vmem:[%s152 + $0xb8] sm:$0xff]
        %v217 = vld [vmem:[%s152 + $0xc0] sm:$0xff]
        %v218 = vld [vmem:[%s152 + $0xc8] sm:$0xff]
        %v219 = vld [vmem:[%s152 + $0xd0] sm:$0xff]
        %v220 = vld [vmem:[%s152 + $0xd8] sm:$0xff]
        %v221 = vld [vmem:[%s152 + $0xe0] sm:$0xff]
        %v222 = vld [vmem:[%s152 + $0xe8] sm:$0xff]
        %v223 = vld [vmem:[%s152 + $0xf0] sm:$0xff]
        %v224 = vld [vmem:[%s152 + $0xf8] sm:$0xff]
        %225 = vmatprep.subr.mxu0 %v194
        %226 = vmatpush1.msra.mxu0 %v193
        %227 = vmatprep.subr.mxu0 %v196
        %228 = vmatpush1.msra.mxu0 %v195
        %229 = vmatprep.subr.mxu0 %v198
        %230 = vmatpush1.msra.mxu0 %v197
        %231 = vmatprep.subr.mxu0 %v200
        %232 = vmatpush1.msra.mxu0 %v199
        %233 = vmatprep.subr.mxu0 %v202
        %234 = vmatpush1.msra.mxu0 %v201
        %235 = vmatprep.subr.mxu0 %v204
        %236 = vmatpush1.msra.mxu0 %v203
        %237 = vmatprep.subr.mxu0 %v206
        %238 = vmatpush1.msra.mxu0 %v205
        %239 = vmatprep.subr.mxu0 %v208
        %240 = vmatpush1.msra.mxu0 %v207
        %241 = vmatprep.subr.mxu0 %v210
        %242 = vmatpush1.msra.mxu0 %v209
        %243 = vmatprep.subr.mxu0 %v212
        %244 = vmatpush1.msra.mxu0 %v211
        %245 = vmatprep.subr.mxu0 %v214
        %246 = vmatpush1.msra.mxu0 %v213
        %247 = vmatprep.subr.mxu0 %v216
        %248 = vmatpush1.msra.mxu0 %v215
        %249 = vmatprep.subr.mxu0 %v218
        %250 = vmatpush1.msra.mxu0 %v217
        %251 = vmatprep.subr.mxu0 %v220
        %252 = vmatpush1.msra.mxu0 %v219
        %253 = vmatprep.subr.mxu0 %v222
        %254 = vmatpush1.msra.mxu0 %v221
        %255 = vmatprep.subr.mxu0 %v224
        %256 = vmatpush1.msra.mxu0 %v223
        %257 = vmatprep.subr.mxu0 0.0
        %258 = vmatpush1.msra.mxu0 0.0
        %259 = vmatprep.subr.mxu0 0.0
        %260 = vmatpush1.msra.mxu0 0.0
        %261 = vmatprep.subr.mxu0 0.0
        %262 = vmatpush1.msra.mxu0 0.0
        %263 = vmatprep.subr.mxu0 0.0
        %264 = vmatpush1.msra.mxu0 0.0
        %265 = vmatprep.subr.mxu0 0.0
        %266 = vmatpush1.msra.mxu0 0.0
        %267 = vmatprep.subr.mxu0 0.0
        %268 = vmatpush1.msra.mxu0 0.0
        %269 = vmatprep.subr.mxu0 0.0
        %270 = vmatpush1.msra.mxu0 0.0
        %271 = vmatprep.subr.mxu0 0.0
        %272 = vmatpush1.msra.mxu0 0.0
        %273 = vmatprep.subr.mxu0 0.0
        %274 = vmatpush1.msra.mxu0 0.0
        %275 = vmatprep.subr.mxu0 0.0
        %276 = vmatpush1.msra.mxu0 0.0
        %277 = vmatprep.subr.mxu0 0.0
        %278 = vmatpush1.msra.mxu0 0.0
        %279 = vmatprep.subr.mxu0 0.0
        %280 = vmatpush1.msra.mxu0 0.0
        %281 = vmatprep.subr.mxu0 0.0
        %282 = vmatpush1.msra.mxu0 0.0
        %283 = vmatprep.subr.mxu0 0.0
        %284 = vmatpush1.msra.mxu0 0.0
        %285 = vmatprep.subr.mxu0 0.0
        %286 = vmatpush1.msra.mxu0 0.0
        %287 = vmatprep.subr.mxu0 0.0
        %288 = vmatpush1.msra.mxu0 0.0
        %289 = vmatprep.mubr.f32.mxu0 0.0
        %290 = vmatmul.mubr.f32.gmra.mrb[0].mxu0 %v177
        %v291 = vpop.f32.mrb[0].mxu0
        %v292 = vadd.f32 0.0, %v291
        %v293 = vpop.f32.mrb[0].mxu0
        %v294 = vadd.f32 0.0, %v293
        %295 = vmatprep.mubr.f32.mxu0 0.0
        %296 = vmatmul.mubr.f32.gmra.mrb[0].mxu0 %v178
        %v297 = vpop.f32.mrb[0].mxu0
        %v298 = vadd.f32 0.0, %v297
        %v299 = vpop.f32.mrb[0].mxu0
        %v300 = vadd.f32 0.0, %v299
        %301 = vmatprep.mubr.f32.mxu0 0.0
        %302 = vmatmul.mubr.f32.gmra.mrb[0].mxu0 %v179
        %v303 = vpop.f32.mrb[0].mxu0
        %v304 = vadd.f32 0.0, %v303
        %v305 = vpop.f32.mrb[0].mxu0
        %v306 = vadd.f32 0.0, %v305
        %307 = vmatprep.mubr.f32.mxu0 0.0
        %308 = vmatmul.mubr.f32.gmra.mrb[0].mxu0 %v180
        %v309 = vpop.f32.mrb[0].mxu0
        %v310 = vadd.f32 0.0, %v309
        %v311 = vpop.f32.mrb[0].mxu0
        %v312 = vadd.f32 0.0, %v311
        %313 = vmatprep.mubr.f32.mxu0 0.0
        %314 = vmatmul.mubr.f32.gmra.mrb[0].mxu0 %v181
        %v315 = vpop.f32.mrb[0].mxu0
        %v316 = vadd.f32 0.0, %v315
        %v317 = vpop.f32.mrb[0].mxu0
        %v318 = vadd.f32 0.0, %v317
        %319 = vmatprep.mubr.f32.mxu0 0.0
        %320 = vmatmul.mubr.f32.gmra.mrb[0].mxu0 %v182
        %v321 = vpop.f32.mrb[0].mxu0
        %v322 = vadd.f32 0.0, %v321
        %v323 = vpop.f32.mrb[0].mxu0
        %v324 = vadd.f32 0.0, %v323
        %325 = vmatprep.mubr.f32.mxu0 0.0
        %326 = vmatmul.mubr.f32.gmra.mrb[0].mxu0 %v183
        %v327 = vpop.f32.mrb[0].mxu0
        %v328 = vadd.f32 0.0, %v327
        %v329 = vpop.f32.mrb[0].mxu0
        %v330 = vadd.f32 0.0, %v329
        %331 = vmatprep.mubr.f32.mxu0 0.0
        %332 = vmatmul.mubr.f32.gmra.mrb[0].mxu0 %v184
        %v333 = vpop.f32.mrb[0].mxu0
        %v334 = vadd.f32 0.0, %v333
        %v335 = vpop.f32.mrb[0].mxu0
        %v336 = vadd.f32 0.0, %v335
        %337 = vmatprep.mubr.f32.mxu0 0.0
        %338 = vmatmul.mubr.f32.gmra.mrb[0].mxu0 %v185
        %v339 = vpop.f32.mrb[0].mxu0
        %v340 = vadd.f32 0.0, %v339
        %v341 = vpop.f32.mrb[0].mxu0
        %v342 = vadd.f32 0.0, %v341
        %343 = vmatprep.mubr.f32.mxu0 0.0
        %344 = vmatmul.mubr.f32.gmra.mrb[0].mxu0 %v186
        %v345 = vpop.f32.mrb[0].mxu0
        %v346 = vadd.f32 0.0, %v345
        %v347 = vpop.f32.mrb[0].mxu0
        %v348 = vadd.f32 0.0, %v347
        %349 = vmatprep.mubr.f32.mxu0 0.0
        %350 = vmatmul.mubr.f32.gmra.mrb[0].mxu0 %v187
        %v351 = vpop.f32.mrb[0].mxu0
        %v352 = vadd.f32 0.0, %v351
        %v353 = vpop.f32.mrb[0].mxu0
        %v354 = vadd.f32 0.0, %v353
        %355 = vmatprep.mubr.f32.mxu0 0.0
        %356 = vmatmul.mubr.f32.gmra.mrb[0].mxu0 %v188
        %v357 = vpop.f32.mrb[0].mxu0
        %v358 = vadd.f32 0.0, %v357
        %v359 = vpop.f32.mrb[0].mxu0
        %v360 = vadd.f32 0.0, %v359
        %361 = vmatprep.mubr.f32.mxu0 0.0
        %362 = vmatmul.mubr.f32.gmra.mrb[0].mxu0 %v189
        %v363 = vpop.f32.mrb[0].mxu0
        %v364 = vadd.f32 0.0, %v363
        %v365 = vpop.f32.mrb[0].mxu0
        %v366 = vadd.f32 0.0, %v365
        %367 = vmatprep.mubr.f32.mxu0 0.0
        %368 = vmatmul.mubr.f32.gmra.mrb[0].mxu0 %v190
        %v369 = vpop.f32.mrb[0].mxu0
        %v370 = vadd.f32 0.0, %v369
        %v371 = vpop.f32.mrb[0].mxu0
        %v372 = vadd.f32 0.0, %v371
        %373 = vmatprep.mubr.f32.mxu0 0.0
        %374 = vmatmul.mubr.f32.gmra.mrb[0].mxu0 %v191
        %v375 = vpop.f32.mrb[0].mxu0
        %v376 = vadd.f32 0.0, %v375
        %v377 = vpop.f32.mrb[0].mxu0
        %v378 = vadd.f32 0.0, %v377
        %379 = vmatprep.mubr.f32.mxu0 0.0
        %380 = vmatmul.mubr.f32.gmra.mrb[0].mxu0 %v192
        %v381 = vpop.f32.mrb[0].mxu0
        %v382 = vadd.f32 0.0, %v381
        %v383 = vpop.f32.mrb[0].mxu0
        %v384 = vadd.f32 0.0, %v383
        %385 = vdwg.mxu0
        %v386 = vadd.f32 %v292, %v294
        %387 = vadd.xlane.f32.xlu0 %v386
        %v388 = vpop.xlane.xlu0 %387
        %v389 = vadd.f32 %v298, %v300
        %390 = vadd.xlane.f32.xlu0 %v389
        %v391 = vpop.xlane.xlu0 %390
        %v392 = vadd.f32 %v304, %v306
        %393 = vadd.xlane.f32.xlu0 %v392
        %v394 = vpop.xlane.xlu0 %393
        %v395 = vadd.f32 %v310, %v312
        %396 = vadd.xlane.f32.xlu0 %v395
        %v397 = vpop.xlane.xlu0 %396
        %v398 = vadd.f32 %v316, %v318
        %399 = vadd.xlane.f32.xlu0 %v398
        %v400 = vpop.xlane.xlu0 %399
        %v401 = vadd.f32 %v322, %v324
        %402 = vadd.xlane.f32.xlu0 %v401
        %v403 = vpop.xlane.xlu0 %402
        %v404 = vadd.f32 %v328, %v330
        %405 = vadd.xlane.f32.xlu0 %v404
        %v406 = vpop.xlane.xlu0 %405
        %v407 = vadd.f32 %v334, %v336
        %408 = vadd.xlane.f32.xlu0 %v407
        %v409 = vpop.xlane.xlu0 %408
        %v410 = vadd.f32 %v340, %v342
        %411 = vadd.xlane.f32.xlu0 %v410
        %v412 = vpop.xlane.xlu0 %411
        %v413 = vadd.f32 %v346, %v348
        %414 = vadd.xlane.f32.xlu0 %v413
        %v415 = vpop.xlane.xlu0 %414
        %v416 = vadd.f32 %v352, %v354
        %417 = vadd.xlane.f32.xlu0 %v416
        %v418 = vpop.xlane.xlu0 %417
        %v419 = vadd.f32 %v358, %v360
        %420 = vadd.xlane.f32.xlu0 %v419
        %v421 = vpop.xlane.xlu0 %420
        %v422 = vadd.f32 %v364, %v366
        %423 = vadd.xlane.f32.xlu0 %v422
        %v424 = vpop.xlane.xlu0 %423
        %v425 = vadd.f32 %v370, %v372
        %426 = vadd.xlane.f32.xlu0 %v425
        %v427 = vpop.xlane.xlu0 %426
        %v428 = vadd.f32 %v376, %v378
        %429 = vadd.xlane.f32.xlu0 %v428
        %v430 = vpop.xlane.xlu0 %429
        %v431 = vadd.f32 %v382, %v384
        %432 = vadd.xlane.f32.xlu0 %v431
        %v433 = vpop.xlane.xlu0 %432
        %v434 = vmul.f32 %v292, %v292
        %v435 = vmul.f32 %v294, %v294
        %v436 = vmul.f32 %v298, %v298
        %v437 = vmul.f32 %v300, %v300
        %v438 = vmul.f32 %v304, %v304
        %v439 = vmul.f32 %v306, %v306
        %v440 = vmul.f32 %v310, %v310
        %v441 = vmul.f32 %v312, %v312
        %v442 = vmul.f32 %v316, %v316
        %v443 = vmul.f32 %v318, %v318
        %v444 = vmul.f32 %v322, %v322
        %v445 = vmul.f32 %v324, %v324
        %v446 = vmul.f32 %v328, %v328
        %v447 = vmul.f32 %v330, %v330
        %v448 = vmul.f32 %v334, %v334
        %v449 = vmul.f32 %v336, %v336
        %v450 = vmul.f32 %v340, %v340
        %v451 = vmul.f32 %v342, %v342
        %v452 = vmul.f32 %v346, %v346
        %v453 = vmul.f32 %v348, %v348
        %v454 = vmul.f32 %v352, %v352
        %v455 = vmul.f32 %v354, %v354
        %v456 = vmul.f32 %v358, %v358
        %v457 = vmul.f32 %v360, %v360
        %v458 = vmul.f32 %v364, %v364
        %v459 = vmul.f32 %v366, %v366
        %v460 = vmul.f32 %v370, %v370
        %v461 = vmul.f32 %v372, %v372
        %v462 = vmul.f32 %v376, %v376
        %v463 = vmul.f32 %v378, %v378
        %v464 = vmul.f32 %v382, %v382
        %v465 = vmul.f32 %v384, %v384
        %v466 = vadd.f32 %v434, %v435
        %467 = vadd.xlane.f32.xlu0 %v466
        %v468 = vpop.xlane.xlu0 %467
        %v469 = vadd.f32 %v436, %v437
        %470 = vadd.xlane.f32.xlu0 %v469
        %v471 = vpop.xlane.xlu0 %470
        %v472 = vadd.f32 %v438, %v439
        %473 = vadd.xlane.f32.xlu0 %v472
        %v474 = vpop.xlane.xlu0 %473
        %v475 = vadd.f32 %v440, %v441
        %476 = vadd.xlane.f32.xlu0 %v475
        %v477 = vpop.xlane.xlu0 %476
        %v478 = vadd.f32 %v442, %v443
        %479 = vadd.xlane.f32.xlu0 %v478
        %v480 = vpop.xlane.xlu0 %479
        %v481 = vadd.f32 %v444, %v445
        %482 = vadd.xlane.f32.xlu0 %v481
        %v483 = vpop.xlane.xlu0 %482
        %v484 = vadd.f32 %v446, %v447
        %485 = vadd.xlane.f32.xlu0 %v484
        %v486 = vpop.xlane.xlu0 %485
        %v487 = vadd.f32 %v448, %v449
        %488 = vadd.xlane.f32.xlu0 %v487
        %v489 = vpop.xlane.xlu0 %488
        %v490 = vadd.f32 %v450, %v451
        %491 = vadd.xlane.f32.xlu0 %v490
        %v492 = vpop.xlane.xlu0 %491
        %v493 = vadd.f32 %v452, %v453
        %494 = vadd.xlane.f32.xlu0 %v493
        %v495 = vpop.xlane.xlu0 %494
        %v496 = vadd.f32 %v454, %v455
        %497 = vadd.xlane.f32.xlu0 %v496
        %v498 = vpop.xlane.xlu0 %497
        %v499 = vadd.f32 %v456, %v457
        %500 = vadd.xlane.f32.xlu0 %v499
        %v501 = vpop.xlane.xlu0 %500
        %v502 = vadd.f32 %v458, %v459
        %503 = vadd.xlane.f32.xlu0 %v502
        %v504 = vpop.xlane.xlu0 %503
        %v505 = vadd.f32 %v460, %v461
        %506 = vadd.xlane.f32.xlu0 %v505
        %v507 = vpop.xlane.xlu0 %506
        %v508 = vadd.f32 %v462, %v463
        %509 = vadd.xlane.f32.xlu0 %v508
        %v510 = vpop.xlane.xlu0 %509
        %v511 = vadd.f32 %v464, %v465
        %512 = vadd.xlane.f32.xlu0 %v511
        %v513 = vpop.xlane.xlu0 %512
        %v514 = vmul.f32 %v388, 0.00390625
        %v515 = vmul.f32 %v391, 0.00390625
        %v516 = vmul.f32 %v394, 0.00390625
        %v517 = vmul.f32 %v397, 0.00390625
        %v518 = vmul.f32 %v400, 0.00390625
        %v519 = vmul.f32 %v403, 0.00390625
        %v520 = vmul.f32 %v406, 0.00390625
        %v521 = vmul.f32 %v409, 0.00390625
        %v522 = vmul.f32 %v412, 0.00390625
        %v523 = vmul.f32 %v415, 0.00390625
        %v524 = vmul.f32 %v418, 0.00390625
        %v525 = vmul.f32 %v421, 0.00390625
        %v526 = vmul.f32 %v424, 0.00390625
        %v527 = vmul.f32 %v427, 0.00390625
        %v528 = vmul.f32 %v430, 0.00390625
        %v529 = vmul.f32 %v433, 0.00390625
        %v530 = vmul.f32 %v468, 0.00390625
        %v531 = vmul.f32 %v471, 0.00390625
        %v532 = vmul.f32 %v474, 0.00390625
        %v533 = vmul.f32 %v477, 0.00390625
        %v534 = vmul.f32 %v480, 0.00390625
        %v535 = vmul.f32 %v483, 0.00390625
        %v536 = vmul.f32 %v486, 0.00390625
        %v537 = vmul.f32 %v489, 0.00390625
        %v538 = vmul.f32 %v492, 0.00390625
        %v539 = vmul.f32 %v495, 0.00390625
        %v540 = vmul.f32 %v498, 0.00390625
        %v541 = vmul.f32 %v501, 0.00390625
        %v542 = vmul.f32 %v504, 0.00390625
        %v543 = vmul.f32 %v507, 0.00390625
        %v544 = vmul.f32 %v510, 0.00390625
        %v545 = vmul.f32 %v513, 0.00390625
        %v546 = vmul.f32 %v514, %v514
        %v547 = vmul.f32 %v515, %v515
        %v548 = vmul.f32 %v516, %v516
        %v549 = vmul.f32 %v517, %v517
        %v550 = vmul.f32 %v518, %v518
        %v551 = vmul.f32 %v519, %v519
        %v552 = vmul.f32 %v520, %v520
        %v553 = vmul.f32 %v521, %v521
        %v554 = vmul.f32 %v522, %v522
        %v555 = vmul.f32 %v523, %v523
        %v556 = vmul.f32 %v524, %v524
        %v557 = vmul.f32 %v525, %v525
        %v558 = vmul.f32 %v526, %v526
        %v559 = vmul.f32 %v527, %v527
        %v560 = vmul.f32 %v528, %v528
        %v561 = vmul.f32 %v529, %v529
        %v562 = vsub.f32 %v530, %v546
        %v563 = vsub.f32 %v531, %v547
        %v564 = vsub.f32 %v532, %v548
        %v565 = vsub.f32 %v533, %v549
        %v566 = vsub.f32 %v534, %v550
        %v567 = vsub.f32 %v535, %v551
        %v568 = vsub.f32 %v536, %v552
        %v569 = vsub.f32 %v537, %v553
        %v570 = vsub.f32 %v538, %v554
        %v571 = vsub.f32 %v539, %v555
        %v572 = vsub.f32 %v540, %v556
        %v573 = vsub.f32 %v541, %v557
        %v574 = vsub.f32 %v542, %v558
        %v575 = vsub.f32 %v543, %v559
        %v576 = vsub.f32 %v544, %v560
        %v577 = vsub.f32 %v545, %v561
        %v578 = vmax.f32 %v562, 0.0
        %v579 = vmax.f32 %v563, 0.0
        %v580 = vmax.f32 %v564, 0.0
        %v581 = vmax.f32 %v565, 0.0
        %v582 = vmax.f32 %v566, 0.0
        %v583 = vmax.f32 %v567, 0.0
        %v584 = vmax.f32 %v568, 0.0
        %v585 = vmax.f32 %v569, 0.0
        %v586 = vmax.f32 %v570, 0.0
        %v587 = vmax.f32 %v571, 0.0
        %v588 = vmax.f32 %v572, 0.0
        %v589 = vmax.f32 %v573, 0.0
        %v590 = vmax.f32 %v574, 0.0
        %v591 = vmax.f32 %v575, 0.0
        %v592 = vmax.f32 %v576, 0.0
        %v593 = vmax.f32 %v577, 0.0
        %v594 = vsub.f32 %v292, %v514
        %v595 = vsub.f32 %v294, %v514
        %v596 = vsub.f32 %v298, %v515
        %v597 = vsub.f32 %v300, %v515
        %v598 = vsub.f32 %v304, %v516
        %v599 = vsub.f32 %v306, %v516
        %v600 = vsub.f32 %v310, %v517
        %v601 = vsub.f32 %v312, %v517
        %v602 = vsub.f32 %v316, %v518
        %v603 = vsub.f32 %v318, %v518
        %v604 = vsub.f32 %v322, %v519
        %v605 = vsub.f32 %v324, %v519
        %v606 = vsub.f32 %v328, %v520
        %v607 = vsub.f32 %v330, %v520
        %v608 = vsub.f32 %v334, %v521
        %v609 = vsub.f32 %v336, %v521
        %v610 = vsub.f32 %v340, %v522
        %v611 = vsub.f32 %v342, %v522
        %v612 = vsub.f32 %v346, %v523
        %v613 = vsub.f32 %v348, %v523
        %v614 = vsub.f32 %v352, %v524
        %v615 = vsub.f32 %v354, %v524
        %v616 = vsub.f32 %v358, %v525
        %v617 = vsub.f32 %v360, %v525
        %v618 = vsub.f32 %v364, %v526
        %v619 = vsub.f32 %v366, %v526
        %v620 = vsub.f32 %v370, %v527
        %v621 = vsub.f32 %v372, %v527
        %v622 = vsub.f32 %v376, %v528
        %v623 = vsub.f32 %v378, %v528
        %v624 = vsub.f32 %v382, %v529
        %v625 = vsub.f32 %v384, %v529
        %v626 = vadd.f32 %v578, 1e-05
        %v627 = vadd.f32 %v579, 1e-05
        %v628 = vadd.f32 %v580, 1e-05
        %v629 = vadd.f32 %v581, 1e-05
        %v630 = vadd.f32 %v582, 1e-05
        %v631 = vadd.f32 %v583, 1e-05
        %v632 = vadd.f32 %v584, 1e-05
        %v633 = vadd.f32 %v585, 1e-05
        %v634 = vadd.f32 %v586, 1e-05
        %v635 = vadd.f32 %v587, 1e-05
        %v636 = vadd.f32 %v588, 1e-05
        %v637 = vadd.f32 %v589, 1e-05
        %v638 = vadd.f32 %v590, 1e-05
        %v639 = vadd.f32 %v591, 1e-05
        %v640 = vadd.f32 %v592, 1e-05
        %v641 = vadd.f32 %v593, 1e-05
        %v642 = vrsqrt.pop %v626
        %v643 = vrsqrt.pop %v627
        %v644 = vrsqrt.pop %v628
        %v645 = vrsqrt.pop %v629
        %v646 = vrsqrt.pop %v630
        %v647 = vrsqrt.pop %v631
        %v648 = vrsqrt.pop %v632
        %v649 = vrsqrt.pop %v633
        %v650 = vrsqrt.pop %v634
        %v651 = vrsqrt.pop %v635
        %v652 = vrsqrt.pop %v636
        %v653 = vrsqrt.pop %v637
        %v654 = vrsqrt.pop %v638
        %v655 = vrsqrt.pop %v639
        %v656 = vrsqrt.pop %v640
        %v657 = vrsqrt.pop %v641
        %v658 = vmul.f32 %v594, %v642
        %v659 = vmul.f32 %v595, %v642
        %v660 = vmul.f32 %v596, %v643
        %v661 = vmul.f32 %v597, %v643
        %v662 = vmul.f32 %v598, %v644
        %v663 = vmul.f32 %v599, %v644
        %v664 = vmul.f32 %v600, %v645
        %v665 = vmul.f32 %v601, %v645
        %v666 = vmul.f32 %v602, %v646
        %v667 = vmul.f32 %v603, %v646
        %v668 = vmul.f32 %v604, %v647
        %v669 = vmul.f32 %v605, %v647
        %v670 = vmul.f32 %v606, %v648
        %v671 = vmul.f32 %v607, %v648
        %v672 = vmul.f32 %v608, %v649
        %v673 = vmul.f32 %v609, %v649
        %v674 = vmul.f32 %v610, %v650
        %v675 = vmul.f32 %v611, %v650
        %v676 = vmul.f32 %v612, %v651
        %v677 = vmul.f32 %v613, %v651
        %v678 = vmul.f32 %v614, %v652
        %v679 = vmul.f32 %v615, %v652
        %v680 = vmul.f32 %v616, %v653
        %v681 = vmul.f32 %v617, %v653
        %v682 = vmul.f32 %v618, %v654
        %v683 = vmul.f32 %v619, %v654
        %v684 = vmul.f32 %v620, %v655
        %v685 = vmul.f32 %v621, %v655
        %v686 = vmul.f32 %v622, %v656
        %v687 = vmul.f32 %v623, %v656
        %v688 = vmul.f32 %v624, %v657
        %v689 = vmul.f32 %v625, %v657
        %690 = vst [vmem:[%s176] sm:$0xff] %v658
        %691 = vst [vmem:[%s176 + $0x8] sm:$0xff] %v659
        %692 = vst [vmem:[%s176 + $0x10] sm:$0xff] %v660
        %693 = vst [vmem:[%s176 + $0x18] sm:$0xff] %v661
        %694 = vst [vmem:[%s176 + $0x20] sm:$0xff] %v662
        %695 = vst [vmem:[%s176 + $0x28] sm:$0xff] %v663
        %696 = vst [vmem:[%s176 + $0x30] sm:$0xff] %v664
        %697 = vst [vmem:[%s176 + $0x38] sm:$0xff] %v665
        %698 = vst [vmem:[%s176 + $0x40] sm:$0xff] %v666
        %699 = vst [vmem:[%s176 + $0x48] sm:$0xff] %v667
        %700 = vst [vmem:[%s176 + $0x50] sm:$0xff] %v668
        %701 = vst [vmem:[%s176 + $0x58] sm:$0xff] %v669
        %702 = vst [vmem:[%s176 + $0x60] sm:$0xff] %v670
        %703 = vst [vmem:[%s176 + $0x68] sm:$0xff] %v671
        %704 = vst [vmem:[%s176 + $0x70] sm:$0xff] %v672
        %705 = vst [vmem:[%s176 + $0x78] sm:$0xff] %v673
        %706 = vst [vmem:[%s176 + $0x80] sm:$0xff] %v674
        %707 = vst [vmem:[%s176 + $0x88] sm:$0xff] %v675
        %708 = vst [vmem:[%s176 + $0x90] sm:$0xff] %v676
        %709 = vst [vmem:[%s176 + $0x98] sm:$0xff] %v677
        %710 = vst [vmem:[%s176 + $0xa0] sm:$0xff] %v678
        %711 = vst [vmem:[%s176 + $0xa8] sm:$0xff] %v679
        %712 = vst [vmem:[%s176 + $0xb0] sm:$0xff] %v680
        %713 = vst [vmem:[%s176 + $0xb8] sm:$0xff] %v681
        %714 = vst [vmem:[%s176 + $0xc0] sm:$0xff] %v682
        %715 = vst [vmem:[%s176 + $0xc8] sm:$0xff] %v683
        %716 = vst [vmem:[%s176 + $0xd0] sm:$0xff] %v684
        %717 = vst [vmem:[%s176 + $0xd8] sm:$0xff] %v685
        %718 = vst [vmem:[%s176 + $0xe0] sm:$0xff] %v686
        %719 = vst [vmem:[%s176 + $0xe8] sm:$0xff] %v687
        %720 = vst [vmem:[%s176 + $0xf0] sm:$0xff] %v688
        %721 = vst [vmem:[%s176 + $0xf8] sm:$0xff] %v689
        %s722 = sand.u32 %s75, 1
        %s723 = scalar_lea.sflag [#allocation4], %s722
        %s724 = sand.u32 %s75, 1
        %s725 = smul.addr %s724, 256
        %s726 = scalar_lea.vmem [#allocation7], %s725
        // Predicated region
        $region37: #{tpu_custom_call.1} parent=27 // pred_check
          %p727 = pneg %p85
        $region38: #{tpu_custom_call.1} parent=27 // pred_check_branch
          %729 = sbr.rel (%p727) target = $region40
        $region39: #{tpu_custom_call.1} parent=27 // pred_region
          %s731 = ssub.s32 4096, 4096
          %732 = vsyncadd %s723, %s731
          %s733 = smul.addr %s20, 32
          %s734 = smul.addr %s733, 128
          %s735 = scalar_lea.hbm %s2, %s734
          %s736 = sshll.u32 %s726, 4
          %s737 = int_to_ptr.vmem [resolvable:$true] %s736
          %742 = dma.vmem_to_hbm [thread:$0]  %s737, 4096, %s735, %s723, 256, 256, 16
        $region40: #{tpu_custom_call.1} parent=27 // pred_fallthru
          _
      $region28: #{tpu_custom_call.1} parent=5 // pred_fallthru
        _
      %p743 = scmp.le.s32.totalorder 2, %s15
      // Predicated region
      $region41: #{tpu_custom_call.1} parent=5 // pred_check
        %p744 = pneg %p743
      $region42: #{tpu_custom_call.1} parent=5 // pred_check_branch
        %746 = sbr.rel (%p744) target = $region44
      $region43: #{tpu_custom_call.1} parent=5 // pred_region
        %s747 = ssub.s32 %s15, 2
        // Predicated region
        $region45: #{tpu_custom_call.1} parent=43 // pred_check
          %p748 = pneg %p91
        $region46: #{tpu_custom_call.1} parent=43 // pred_check_branch
          %750 = sbr.rel (%p748) target = $region48
        $region47: #{tpu_custom_call.1} parent=43 // pred_region
          %s751 = sand.u32 %s76, 1
          %s752 = scalar_lea.sflag [#allocation4], %s751
          %s753 = sand.u32 %s76, 1
          %s754 = smul.addr %s753, 256
          %s755 = scalar_lea.vmem [#allocation7], %s754
          %756 = dma.done %s752, 4096
        $region48: #{tpu_custom_call.1} parent=43 // pred_fallthru
          _
      $region44: #{tpu_custom_call.1} parent=5 // pred_fallthru
        _
    $region6: #{tpu_custom_call.1} parent=1 // loop_footer
      %s19 = sadd.s32 1, %s15
    $region7: #{tpu_custom_call.1} parent=1 // loop_footer_branch
      %14 = sbr.rel target = $region3
    $region8: #{tpu_custom_call.1} parent=1 // loop_exit
      _
    %757 = vsyncpa [#allocation3], 1
    %s758 = scalar_lea.sflag [#allocation3], 1
    %759 = vsyncpa %s758, 1
    %760 = vsyncpa [#allocation6], 1
    %761 = vsyncpa [#allocation4], 1
    %s762 = scalar_lea.sflag [#allocation4], 1
    %763 = vsyncpa %s762, 1

// kernel: tpu_custom_call.1
$region0: #{tpu_custom_call.1}
  #allocation0 [shape = 'u32[]', space=smem, size = 0x4, offset = 0x4, fixed_abs, tag = 'smem constant byte address 0x4 - core index']
  #allocation1 [shape = 'u32[144,128]{1,0:T(1,128)}', space=vmem, size = 0x12000, scoped, tag = 'internal scratch']
  %s0 = inlined_call_operand.hbm [shape: f32[2,128,256], index: 0, kind: input, shape index: {}]
  %s1 = inlined_call_operand.hbm [shape: f32[128,128], index: 1, kind: input, shape index: {}]
  %s2 = inlined_call_operand.hbm [shape: f32[2,128,256], index: 2, kind: output, shape index: {}]
  %s3 = sld [smem:[#allocation0]]
  $region49: #{tpu_custom_call.1} parent=0
    _
  %s5 = ssub.s32 1, %s3
  %s6 = scalar_select 0, %s5, %s3
  $region1: #{tpu_custom_call.1} parent=0
    #allocation2 [shape = 'u8[262144]{0}', space=vmem, size = 0x40000, scoped, tag = 'input window, operand 0']
    #allocation3 [shape = 's32[2]{0}', space=sflag, size = 0x8, scoped, tag = 'scoped memory for tpu_custom_call.1']
    #allocation4 [shape = 's32[2]{0}', space=sflag, size = 0x8, scoped, tag = 'scoped memory for tpu_custom_call.1']
    #allocation5 [shape = 'u8[65536]{0}', space=vmem, size = 0x10000, scoped, tag = 'input window, operand 1, single buffered']
    #allocation6 [shape = 's32[1]{0}', space=sflag, size = 0x4, scoped, tag = 'scoped memory for tpu_custom_call.1']
    #allocation7 [shape = 'u8[262144]{0}', space=vmem, size = 0x40000, scoped, tag = 'output window, operand 0']
    %7 = vsyncpa [#allocation3], 0
    %s8 = scalar_lea.sflag [#allocation3], 1
    %9 = vsyncpa %s8, 0
    %10 = vsyncpa [#allocation6], 0
    %11 = vsyncpa [#allocation4], 0
    %s12 = scalar_lea.sflag [#allocation4], 1
    %13 = vsyncpa %s12, 0
    loop: start=0, step=1, limit=4
    $region2: #{tpu_custom_call.1} parent=1 // loop_pre_header
      _
    $region3: #{tpu_custom_call.1} parent=1 // loop_header
      %s15 = sphi 0, %s19
      %p16 = scmp.ge.s32.totalorder %s15, 4
      %s25 = sphi 0, %s27
      %s28 = sphi 0, %s25
      %s29 = sphi 0, %s28
      %s45 = sphi 0, %s29
      %s49 = sphi 0, %s49
      %s51 = sphi 0, %s49
      %s52 = sphi 0, %s51
      %s66 = sphi 0, %s52
      %s72 = sphi 0, %s74
      %s75 = sphi 0, %s72
      %s76 = sphi 0, %s75
      %s92 = sphi 0, %s76
    $region4: #{tpu_custom_call.1} parent=1 // loop_header_branch
      %18 = sbr.rel (%p16) target = $region8
    $region5: #{tpu_custom_call.1} parent=1 // loop_body
      %s20 = ssub.s32 %s15, 1
      %s21 = ssub.s32 %s15, 2
      %s22 = sadd.s32 %s15, 1
      %s23 = ssub.s32 %s15, %s22
      %p24 = scmp.eq.s32.totalorder %s23, 0
      %s26 = sadd.s32 %s25, 1
      %s27 = scalar_select %p24, %s25, %s26
      %p30 = pneg %p24
      %p31 = scmp.eq.s32.totalorder %s15, 1
      %p32 = por %p30, %p31
      %p33 = scmp.ne.s32.totalorder %s25, %s28
      %p34 = scmp.eq.s32.totalorder %s15, 0
      %p35 = por %p33, %p34
      %p36 = scmp.ne.s32.totalorder %s25, %s28
      %p37 = scmp.eq.s32.totalorder %s20, 1
      %p38 = por %p36, %p37
      %p39 = scmp.ne.s32.totalorder %s28, %s29
      %p40 = scmp.eq.s32.totalorder %s20, 0
      %p41 = por %p39, %p40
      %p42 = scmp.ne.s32.totalorder %s28, %s29
      %p43 = scmp.eq.s32.totalorder %s21, 1
      %p44 = por %p42, %p43
      %p46 = scmp.ne.s32.totalorder %s29, %s45
      %p47 = scmp.eq.s32.totalorder %s21, 0
      %p48 = por %p46, %p47
      %s50 = sadd.s32 %s49, 1
      %p53 = scmp.eq.s32.totalorder %s15, 1
      %p54 = scmp.ne.s32.totalorder %s49, %s51
      %p55 = scmp.eq.s32.totalorder %s15, 0
      %p56 = por %p54, %p55
      %p57 = scmp.ne.s32.totalorder %s49, %s51
      %p58 = scmp.eq.s32.totalorder %s20, 1
      %p59 = por %p57, %p58
      %p60 = scmp.ne.s32.totalorder %s51, %s52
      %p61 = scmp.eq.s32.totalorder %s20, 0
      %p62 = por %p60, %p61
      %p63 = scmp.ne.s32.totalorder %s51, %s52
      %p64 = scmp.eq.s32.totalorder %s21, 1
      %p65 = por %p63, %p64
      %p67 = scmp.ne.s32.totalorder %s52, %s66
      %p68 = scmp.eq.s32.totalorder %s21, 0
      %p69 = por %p67, %p68
      %s70 = ssub.s32 %s15, %s22
      %p71 = scmp.eq.s32.totalorder %s70, 0
      %s73 = sadd.s32 %s72, 1
      %s74 = scalar_select %p71, %s72, %s73
      %p77 = pneg %p71
      %p78 = scmp.eq.s32.totalorder %s15, 1
      %p79 = por %p77, %p78
      %p80 = scmp.ne.s32.totalorder %s72, %s75
      %p81 = scmp.eq.s32.totalorder %s15, 0
      %p82 = por %p80, %p81
      %p83 = scmp.ne.s32.totalorder %s72, %s75
      %p84 = scmp.eq.s32.totalorder %s20, 1
      %p85 = por %p83, %p84
      %p86 = scmp.ne.s32.totalorder %s75, %s76
      %p87 = scmp.eq.s32.totalorder %s20, 0
      %p88 = por %p86, %p87
      %p89 = scmp.ne.s32.totalorder %s75, %s76
      %p90 = scmp.eq.s32.totalorder %s21, 1
      %p91 = por %p89, %p90
      %p93 = scmp.ne.s32.totalorder %s76, %s92
      %p94 = scmp.eq.s32.totalorder %s21, 0
      %p95 = por %p93, %p94
      %p96 = scmp.le.s32.totalorder 1, %s15
      %p97 = scmp.lt.s32.totalorder %s15, 3
      %p98 = pnand %p96, %p97
      %p99 = pneg %p98
      // Predicated region
      $region9: #{tpu_custom_call.1} parent=5 // pred_check
        _
      $region10: #{tpu_custom_call.1} parent=5 // pred_check_branch
        %101 = sbr.rel (%p98) target = $region12
      $region11: #{tpu_custom_call.1} parent=5 // pred_region
        %s102 = ssub.s32 %s15, 1
        // Predicated region
        $region13: #{tpu_custom_call.1} parent=11 // pred_check
          %p103 = pneg %p62
        $region14: #{tpu_custom_call.1} parent=11 // pred_check_branch
          %105 = sbr.rel (%p103) target = $region16
        $region15: #{tpu_custom_call.1} parent=11 // pred_region
          %s107 = ssub.s32 2048, 2048
          %108 = vsyncadd [#allocation6], %s107
          %s109 = sshll.u32 [#allocation5], 4
          %s110 = int_to_ptr.vmem [resolvable:$true] %s109
          %115 = dma.hbm_to_vmem [thread:$0]  %s1, 2048, %s110, [#allocation6], 128, 128, 8
        $region16: #{tpu_custom_call.1} parent=11 // pred_fallthru
          _
      $region12: #{tpu_custom_call.1} parent=5 // pred_fallthru
        _
      %p116 = scmp.lt.s32.totalorder %s15, 2
      // Predicated region
      $region17: #{tpu_custom_call.1} parent=5 // pred_check
        %p117 = pneg %p116
      $region18: #{tpu_custom_call.1} parent=5 // pred_check_branch
        %119 = sbr.rel (%p117) target = $region20
      $region19: #{tpu_custom_call.1} parent=5 // pred_region
        // Predicated region
        $region21: #{tpu_custom_call.1} parent=19 // pred_check
          %p120 = pneg %p35
        $region22: #{tpu_custom_call.1} parent=19 // pred_check_branch
          %122 = sbr.rel (%p120) target = $region24
        $region23: #{tpu_custom_call.1} parent=19 // pred_region
          %s123 = sand.u32 %s25, 1
          %s124 = scalar_lea.sflag [#allocation3], %s123
          %s125 = sand.u32 %s25, 1
          %s126 = smul.addr %s125, 256
          %s127 = scalar_lea.vmem [#allocation2], %s126
          %s129 = ssub.s32 4096, 4096
          %130 = vsyncadd %s124, %s129
          %s131 = smul.addr %s15, 32
          %s132 = smul.addr %s131, 128
          %s133 = scalar_lea.hbm %s0, %s132
          %s134 = sshll.u32 %s127, 4
          %s135 = int_to_ptr.vmem [resolvable:$true] %s134
          %140 = dma.hbm_to_vmem [thread:$0]  %s133, 4096, %s135, %s124, 256, 256, 16
        $region24: #{tpu_custom_call.1} parent=19 // pred_fallthru
          _
      $region20: #{tpu_custom_call.1} parent=5 // pred_fallthru
        _
      %p141 = scmp.le.s32.totalorder 1, %s15
      %p142 = scmp.lt.s32.totalorder %s15, 3
      %p143 = pnand %p141, %p142
      %p144 = pneg %p143
      // Predicated region
      $region25: #{tpu_custom_call.1} parent=5 // pred_check
        _
      $region26: #{tpu_custom_call.1} parent=5 // pred_check_branch
        %146 = sbr.rel (%p143) target = $region28
      $region27: #{tpu_custom_call.1} parent=5 // pred_region
        %s147 = ssub.s32 %s15, 1
        %s148 = sand.u32 %s28, 1
        %s149 = scalar_lea.sflag [#allocation3], %s148
        %s150 = sand.u32 %s28, 1
        %s151 = smul.addr %s150, 256
        %s152 = scalar_lea.vmem [#allocation2], %s151
        // Predicated region
        $region29: #{tpu_custom_call.1} parent=27 // pred_check
          %p153 = pneg %p41
        $region30: #{tpu_custom_call.1} parent=27 // pred_check_branch
          %155 = sbr.rel (%p153) target = $region32
        $region31: #{tpu_custom_call.1} parent=27 // pred_region
          %156 = dma.done %s149, 4096
        $region32: #{tpu_custom_call.1} parent=27 // pred_fallthru
          _
        // Predicated region
        $region33: #{tpu_custom_call.1} parent=27 // pred_check
          %p157 = pneg %p62
        $region34: #{tpu_custom_call.1} parent=27 // pred_check_branch
          %159 = sbr.rel (%p157) target = $region36
        $region35: #{tpu_custom_call.1} parent=27 // pred_region
          %160 = dma.done [#allocation6], 2048
        $region36: #{tpu_custom_call.1} parent=27 // pred_fallthru
          _
        %s161 = sand.u32 %s28, 1
        %s162 = scalar_lea.sflag [#allocation3], %s161
        %s163 = sand.u32 %s28, 1
        %s164 = smul.addr %s163, 256
        %s165 = scalar_lea.vmem [#allocation2], %s164
        %p166 = pneg %p41
        %p167 = pneg %p38
        %p168 = pneg %p62
        %p169 = pneg %p59
        %p170 = pneg %p88
        %p171 = pneg %p85
        %s172 = sand.u32 %s75, 1
        %s173 = scalar_lea.sflag [#allocation4], %s172
        %s174 = sand.u32 %s75, 1
        %s175 = smul.addr %s174, 256
        %s176 = scalar_lea.vmem [#allocation7], %s175
        %v177 = vld [vmem:[#allocation5] sm:$0xff]
        %v178 = vld [vmem:[#allocation5 + $0x8] sm:$0xff]
        %v179 = vld [vmem:[#allocation5 + $0x10] sm:$0xff]
        %v180 = vld [vmem:[#allocation5 + $0x18] sm:$0xff]
        %v181 = vld [vmem:[#allocation5 + $0x20] sm:$0xff]
        %v182 = vld [vmem:[#allocation5 + $0x28] sm:$0xff]
        %v183 = vld [vmem:[#allocation5 + $0x30] sm:$0xff]
        %v184 = vld [vmem:[#allocation5 + $0x38] sm:$0xff]
        %v185 = vld [vmem:[#allocation5 + $0x40] sm:$0xff]
        %v186 = vld [vmem:[#allocation5 + $0x48] sm:$0xff]
        %v187 = vld [vmem:[#allocation5 + $0x50] sm:$0xff]
        %v188 = vld [vmem:[#allocation5 + $0x58] sm:$0xff]
        %v189 = vld [vmem:[#allocation5 + $0x60] sm:$0xff]
        %v190 = vld [vmem:[#allocation5 + $0x68] sm:$0xff]
        %v191 = vld [vmem:[#allocation5 + $0x70] sm:$0xff]
        %v192 = vld [vmem:[#allocation5 + $0x78] sm:$0xff]
        %v193 = vld [vmem:[%s152] sm:$0xff]
        %v194 = vld [vmem:[%s152 + $0x8] sm:$0xff]
        %v195 = vld [vmem:[%s152 + $0x10] sm:$0xff]
        %v196 = vld [vmem:[%s152 + $0x18] sm:$0xff]
        %v197 = vld [vmem:[%s152 + $0x20] sm:$0xff]
        %v198 = vld [vmem:[%s152 + $0x28] sm:$0xff]
        %v199 = vld [vmem:[%s152 + $0x30] sm:$0xff]
        %v200 = vld [vmem:[%s152 + $0x38] sm:$0xff]
        %v201 = vld [vmem:[%s152 + $0x40] sm:$0xff]
        %v202 = vld [vmem:[%s152 + $0x48] sm:$0xff]
        %v203 = vld [vmem:[%s152 + $0x50] sm:$0xff]
        %v204 = vld [vmem:[%s152 + $0x58] sm:$0xff]
        %v205 = vld [vmem:[%s152 + $0x60] sm:$0xff]
        %v206 = vld [vmem:[%s152 + $0x68] sm:$0xff]
        %v207 = vld [vmem:[%s152 + $0x70] sm:$0xff]
        %v208 = vld [vmem:[%s152 + $0x78] sm:$0xff]
        %v209 = vld [vmem:[%s152 + $0x80] sm:$0xff]
        %v210 = vld [vmem:[%s152 + $0x88] sm:$0xff]
        %v211 = vld [vmem:[%s152 + $0x90] sm:$0xff]
        %v212 = vld [vmem:[%s152 + $0x98] sm:$0xff]
        %v213 = vld [vmem:[%s152 + $0xa0] sm:$0xff]
        %v214 = vld [vmem:[%s152 + $0xa8] sm:$0xff]
        %v215 = vld [vmem:[%s152 + $0xb0] sm:$0xff]
        %v216 = vld [vmem:[%s152 + $0xb8] sm:$0xff]
        %v217 = vld [vmem:[%s152 + $0xc0] sm:$0xff]
        %v218 = vld [vmem:[%s152 + $0xc8] sm:$0xff]
        %v219 = vld [vmem:[%s152 + $0xd0] sm:$0xff]
        %v220 = vld [vmem:[%s152 + $0xd8] sm:$0xff]
        %v221 = vld [vmem:[%s152 + $0xe0] sm:$0xff]
        %v222 = vld [vmem:[%s152 + $0xe8] sm:$0xff]
        %v223 = vld [vmem:[%s152 + $0xf0] sm:$0xff]
        %v224 = vld [vmem:[%s152 + $0xf8] sm:$0xff]
        %225 = vmatprep.subr.mxu0 %v194
        %226 = vmatpush1.msra.mxu0 %v193
        %227 = vmatprep.subr.mxu0 %v196
        %228 = vmatpush1.msra.mxu0 %v195
        %229 = vmatprep.subr.mxu0 %v198
        %230 = vmatpush1.msra.mxu0 %v197
        %231 = vmatprep.subr.mxu0 %v200
        %232 = vmatpush1.msra.mxu0 %v199
        %233 = vmatprep.subr.mxu0 %v202
        %234 = vmatpush1.msra.mxu0 %v201
        %235 = vmatprep.subr.mxu0 %v204
        %236 = vmatpush1.msra.mxu0 %v203
        %237 = vmatprep.subr.mxu0 %v206
        %238 = vmatpush1.msra.mxu0 %v205
        %239 = vmatprep.subr.mxu0 %v208
        %240 = vmatpush1.msra.mxu0 %v207
        %241 = vmatprep.subr.mxu0 %v210
        %242 = vmatpush1.msra.mxu0 %v209
        %243 = vmatprep.subr.mxu0 %v212
        %244 = vmatpush1.msra.mxu0 %v211
        %245 = vmatprep.subr.mxu0 %v214
        %246 = vmatpush1.msra.mxu0 %v213
        %247 = vmatprep.subr.mxu0 %v216
        %248 = vmatpush1.msra.mxu0 %v215
        %249 = vmatprep.subr.mxu0 %v218
        %250 = vmatpush1.msra.mxu0 %v217
        %251 = vmatprep.subr.mxu0 %v220
        %252 = vmatpush1.msra.mxu0 %v219
        %253 = vmatprep.subr.mxu0 %v222
        %254 = vmatpush1.msra.mxu0 %v221
        %255 = vmatprep.subr.mxu0 %v224
        %256 = vmatpush1.msra.mxu0 %v223
        %257 = vmatprep.subr.mxu0 0.0
        %258 = vmatpush1.msra.mxu0 0.0
        %259 = vmatprep.subr.mxu0 0.0
        %260 = vmatpush1.msra.mxu0 0.0
        %261 = vmatprep.subr.mxu0 0.0
        %262 = vmatpush1.msra.mxu0 0.0
        %263 = vmatprep.subr.mxu0 0.0
        %264 = vmatpush1.msra.mxu0 0.0
        %265 = vmatprep.subr.mxu0 0.0
        %266 = vmatpush1.msra.mxu0 0.0
        %267 = vmatprep.subr.mxu0 0.0
        %268 = vmatpush1.msra.mxu0 0.0
        %269 = vmatprep.subr.mxu0 0.0
        %270 = vmatpush1.msra.mxu0 0.0
        %271 = vmatprep.subr.mxu0 0.0
        %272 = vmatpush1.msra.mxu0 0.0
        %273 = vmatprep.subr.mxu0 0.0
        %274 = vmatpush1.msra.mxu0 0.0
        %275 = vmatprep.subr.mxu0 0.0
        %276 = vmatpush1.msra.mxu0 0.0
        %277 = vmatprep.subr.mxu0 0.0
        %278 = vmatpush1.msra.mxu0 0.0
        %279 = vmatprep.subr.mxu0 0.0
        %280 = vmatpush1.msra.mxu0 0.0
        %281 = vmatprep.subr.mxu0 0.0
        %282 = vmatpush1.msra.mxu0 0.0
        %283 = vmatprep.subr.mxu0 0.0
        %284 = vmatpush1.msra.mxu0 0.0
        %285 = vmatprep.subr.mxu0 0.0
        %286 = vmatpush1.msra.mxu0 0.0
        %287 = vmatprep.subr.mxu0 0.0
        %288 = vmatpush1.msra.mxu0 0.0
        %289 = vmatprep.mubr.f32.mxu0 0.0
        %290 = vmatmul.mubr.f32.gmra.mrb[0].mxu0 %v177
        %v291 = vpop.f32.mrb[0].mxu0
        %v292 = vadd.f32 0.0, %v291
        %v293 = vpop.f32.mrb[0].mxu0
        %v294 = vadd.f32 0.0, %v293
        %295 = vmatprep.mubr.f32.mxu0 0.0
        %296 = vmatmul.mubr.f32.gmra.mrb[0].mxu0 %v178
        %v297 = vpop.f32.mrb[0].mxu0
        %v298 = vadd.f32 0.0, %v297
        %v299 = vpop.f32.mrb[0].mxu0
        %v300 = vadd.f32 0.0, %v299
        %301 = vmatprep.mubr.f32.mxu0 0.0
        %302 = vmatmul.mubr.f32.gmra.mrb[0].mxu0 %v179
        %v303 = vpop.f32.mrb[0].mxu0
        %v304 = vadd.f32 0.0, %v303
        %v305 = vpop.f32.mrb[0].mxu0
        %v306 = vadd.f32 0.0, %v305
        %307 = vmatprep.mubr.f32.mxu0 0.0
        %308 = vmatmul.mubr.f32.gmra.mrb[0].mxu0 %v180
        %v309 = vpop.f32.mrb[0].mxu0
        %v310 = vadd.f32 0.0, %v309
        %v311 = vpop.f32.mrb[0].mxu0
        %v312 = vadd.f32 0.0, %v311
        %313 = vmatprep.mubr.f32.mxu0 0.0
        %314 = vmatmul.mubr.f32.gmra.mrb[0].mxu0 %v181
        %v315 = vpop.f32.mrb[0].mxu0
        %v316 = vadd.f32 0.0, %v315
        %v317 = vpop.f32.mrb[0].mxu0
        %v318 = vadd.f32 0.0, %v317
        %319 = vmatprep.mubr.f32.mxu0 0.0
        %320 = vmatmul.mubr.f32.gmra.mrb[0].mxu0 %v182
        %v321 = vpop.f32.mrb[0].mxu0
        %v322 = vadd.f32 0.0, %v321
        %v323 = vpop.f32.mrb[0].mxu0
        %v324 = vadd.f32 0.0, %v323
        %325 = vmatprep.mubr.f32.mxu0 0.0
        %326 = vmatmul.mubr.f32.gmra.mrb[0].mxu0 %v183
        %v327 = vpop.f32.mrb[0].mxu0
        %v328 = vadd.f32 0.0, %v327
        %v329 = vpop.f32.mrb[0].mxu0
        %v330 = vadd.f32 0.0, %v329
        %331 = vmatprep.mubr.f32.mxu0 0.0
        %332 = vmatmul.mubr.f32.gmra.mrb[0].mxu0 %v184
        %v333 = vpop.f32.mrb[0].mxu0
        %v334 = vadd.f32 0.0, %v333
        %v335 = vpop.f32.mrb[0].mxu0
        %v336 = vadd.f32 0.0, %v335
        %337 = vmatprep.mubr.f32.mxu0 0.0
        %338 = vmatmul.mubr.f32.gmra.mrb[0].mxu0 %v185
        %v339 = vpop.f32.mrb[0].mxu0
        %v340 = vadd.f32 0.0, %v339
        %v341 = vpop.f32.mrb[0].mxu0
        %v342 = vadd.f32 0.0, %v341
        %343 = vmatprep.mubr.f32.mxu0 0.0
        %344 = vmatmul.mubr.f32.gmra.mrb[0].mxu0 %v186
        %v345 = vpop.f32.mrb[0].mxu0
        %v346 = vadd.f32 0.0, %v345
        %v347 = vpop.f32.mrb[0].mxu0
        %v348 = vadd.f32 0.0, %v347
        %349 = vmatprep.mubr.f32.mxu0 0.0
        %350 = vmatmul.mubr.f32.gmra.mrb[0].mxu0 %v187
        %v351 = vpop.f32.mrb[0].mxu0
        %v352 = vadd.f32 0.0, %v351
        %v353 = vpop.f32.mrb[0].mxu0
        %v354 = vadd.f32 0.0, %v353
        %355 = vmatprep.mubr.f32.mxu0 0.0
        %356 = vmatmul.mubr.f32.gmra.mrb[0].mxu0 %v188
        %v357 = vpop.f32.mrb[0].mxu0
        %v358 = vadd.f32 0.0, %v357
        %v359 = vpop.f32.mrb[0].mxu0
        %v360 = vadd.f32 0.0, %v359
        %361 = vmatprep.mubr.f32.mxu0 0.0
        %362 = vmatmul.mubr.f32.gmra.mrb[0].mxu0 %v189
        %v363 = vpop.f32.mrb[0].mxu0
        %v364 = vadd.f32 0.0, %v363
        %v365 = vpop.f32.mrb[0].mxu0
        %v366 = vadd.f32 0.0, %v365
        %367 = vmatprep.mubr.f32.mxu0 0.0
        %368 = vmatmul.mubr.f32.gmra.mrb[0].mxu0 %v190
        %v369 = vpop.f32.mrb[0].mxu0
        %v370 = vadd.f32 0.0, %v369
        %v371 = vpop.f32.mrb[0].mxu0
        %v372 = vadd.f32 0.0, %v371
        %373 = vmatprep.mubr.f32.mxu0 0.0
        %374 = vmatmul.mubr.f32.gmra.mrb[0].mxu0 %v191
        %v375 = vpop.f32.mrb[0].mxu0
        %v376 = vadd.f32 0.0, %v375
        %v377 = vpop.f32.mrb[0].mxu0
        %v378 = vadd.f32 0.0, %v377
        %379 = vmatprep.mubr.f32.mxu0 0.0
        %380 = vmatmul.mubr.f32.gmra.mrb[0].mxu0 %v192
        %v381 = vpop.f32.mrb[0].mxu0
        %v382 = vadd.f32 0.0, %v381
        %v383 = vpop.f32.mrb[0].mxu0
        %v384 = vadd.f32 0.0, %v383
        %385 = vdwg.mxu0
        %v386 = vadd.f32 %v292, %v294
        %387 = vadd.xlane.f32.xlu0 %v386
        %v388 = vpop.xlane.xlu0 %387
        %v389 = vadd.f32 %v298, %v300
        %390 = vadd.xlane.f32.xlu0 %v389
        %v391 = vpop.xlane.xlu0 %390
        %v392 = vadd.f32 %v304, %v306
        %393 = vadd.xlane.f32.xlu0 %v392
        %v394 = vpop.xlane.xlu0 %393
        %v395 = vadd.f32 %v310, %v312
        %396 = vadd.xlane.f32.xlu0 %v395
        %v397 = vpop.xlane.xlu0 %396
        %v398 = vadd.f32 %v316, %v318
        %399 = vadd.xlane.f32.xlu0 %v398
        %v400 = vpop.xlane.xlu0 %399
        %v401 = vadd.f32 %v322, %v324
        %402 = vadd.xlane.f32.xlu0 %v401
        %v403 = vpop.xlane.xlu0 %402
        %v404 = vadd.f32 %v328, %v330
        %405 = vadd.xlane.f32.xlu0 %v404
        %v406 = vpop.xlane.xlu0 %405
        %v407 = vadd.f32 %v334, %v336
        %408 = vadd.xlane.f32.xlu0 %v407
        %v409 = vpop.xlane.xlu0 %408
        %v410 = vadd.f32 %v340, %v342
        %411 = vadd.xlane.f32.xlu0 %v410
        %v412 = vpop.xlane.xlu0 %411
        %v413 = vadd.f32 %v346, %v348
        %414 = vadd.xlane.f32.xlu0 %v413
        %v415 = vpop.xlane.xlu0 %414
        %v416 = vadd.f32 %v352, %v354
        %417 = vadd.xlane.f32.xlu0 %v416
        %v418 = vpop.xlane.xlu0 %417
        %v419 = vadd.f32 %v358, %v360
        %420 = vadd.xlane.f32.xlu0 %v419
        %v421 = vpop.xlane.xlu0 %420
        %v422 = vadd.f32 %v364, %v366
        %423 = vadd.xlane.f32.xlu0 %v422
        %v424 = vpop.xlane.xlu0 %423
        %v425 = vadd.f32 %v370, %v372
        %426 = vadd.xlane.f32.xlu0 %v425
        %v427 = vpop.xlane.xlu0 %426
        %v428 = vadd.f32 %v376, %v378
        %429 = vadd.xlane.f32.xlu0 %v428
        %v430 = vpop.xlane.xlu0 %429
        %v431 = vadd.f32 %v382, %v384
        %432 = vadd.xlane.f32.xlu0 %v431
        %v433 = vpop.xlane.xlu0 %432
        %v434 = vmul.f32 %v292, %v292
        %v435 = vmul.f32 %v294, %v294
        %v436 = vmul.f32 %v298, %v298
        %v437 = vmul.f32 %v300, %v300
        %v438 = vmul.f32 %v304, %v304
        %v439 = vmul.f32 %v306, %v306
        %v440 = vmul.f32 %v310, %v310
        %v441 = vmul.f32 %v312, %v312
        %v442 = vmul.f32 %v316, %v316
        %v443 = vmul.f32 %v318, %v318
        %v444 = vmul.f32 %v322, %v322
        %v445 = vmul.f32 %v324, %v324
        %v446 = vmul.f32 %v328, %v328
        %v447 = vmul.f32 %v330, %v330
        %v448 = vmul.f32 %v334, %v334
        %v449 = vmul.f32 %v336, %v336
        %v450 = vmul.f32 %v340, %v340
        %v451 = vmul.f32 %v342, %v342
        %v452 = vmul.f32 %v346, %v346
        %v453 = vmul.f32 %v348, %v348
        %v454 = vmul.f32 %v352, %v352
        %v455 = vmul.f32 %v354, %v354
        %v456 = vmul.f32 %v358, %v358
        %v457 = vmul.f32 %v360, %v360
        %v458 = vmul.f32 %v364, %v364
        %v459 = vmul.f32 %v366, %v366
        %v460 = vmul.f32 %v370, %v370
        %v461 = vmul.f32 %v372, %v372
        %v462 = vmul.f32 %v376, %v376
        %v463 = vmul.f32 %v378, %v378
        %v464 = vmul.f32 %v382, %v382
        %v465 = vmul.f32 %v384, %v384
        %v466 = vadd.f32 %v434, %v435
        %467 = vadd.xlane.f32.xlu0 %v466
        %v468 = vpop.xlane.xlu0 %467
        %v469 = vadd.f32 %v436, %v437
        %470 = vadd.xlane.f32.xlu0 %v469
        %v471 = vpop.xlane.xlu0 %470
        %v472 = vadd.f32 %v438, %v439
        %473 = vadd.xlane.f32.xlu0 %v472
        %v474 = vpop.xlane.xlu0 %473
        %v475 = vadd.f32 %v440, %v441
        %476 = vadd.xlane.f32.xlu0 %v475
        %v477 = vpop.xlane.xlu0 %476
        %v478 = vadd.f32 %v442, %v443
        %479 = vadd.xlane.f32.xlu0 %v478
        %v480 = vpop.xlane.xlu0 %479
        %v481 = vadd.f32 %v444, %v445
        %482 = vadd.xlane.f32.xlu0 %v481
        %v483 = vpop.xlane.xlu0 %482
        %v484 = vadd.f32 %v446, %v447
        %485 = vadd.xlane.f32.xlu0 %v484
        %v486 = vpop.xlane.xlu0 %485
        %v487 = vadd.f32 %v448, %v449
        %488 = vadd.xlane.f32.xlu0 %v487
        %v489 = vpop.xlane.xlu0 %488
        %v490 = vadd.f32 %v450, %v451
        %491 = vadd.xlane.f32.xlu0 %v490
        %v492 = vpop.xlane.xlu0 %491
        %v493 = vadd.f32 %v452, %v453
        %494 = vadd.xlane.f32.xlu0 %v493
        %v495 = vpop.xlane.xlu0 %494
        %v496 = vadd.f32 %v454, %v455
        %497 = vadd.xlane.f32.xlu0 %v496
        %v498 = vpop.xlane.xlu0 %497
        %v499 = vadd.f32 %v456, %v457
        %500 = vadd.xlane.f32.xlu0 %v499
        %v501 = vpop.xlane.xlu0 %500
        %v502 = vadd.f32 %v458, %v459
        %503 = vadd.xlane.f32.xlu0 %v502
        %v504 = vpop.xlane.xlu0 %503
        %v505 = vadd.f32 %v460, %v461
        %506 = vadd.xlane.f32.xlu0 %v505
        %v507 = vpop.xlane.xlu0 %506
        %v508 = vadd.f32 %v462, %v463
        %509 = vadd.xlane.f32.xlu0 %v508
        %v510 = vpop.xlane.xlu0 %509
        %v511 = vadd.f32 %v464, %v465
        %512 = vadd.xlane.f32.xlu0 %v511
        %v513 = vpop.xlane.xlu0 %512
        %v514 = vmul.f32 %v388, 0.00390625
        %v515 = vmul.f32 %v391, 0.00390625
        %v516 = vmul.f32 %v394, 0.00390625
        %v517 = vmul.f32 %v397, 0.00390625
        %v518 = vmul.f32 %v400, 0.00390625
        %v519 = vmul.f32 %v403, 0.00390625
        %v520 = vmul.f32 %v406, 0.00390625
        %v521 = vmul.f32 %v409, 0.00390625
        %v522 = vmul.f32 %v412, 0.00390625
        %v523 = vmul.f32 %v415, 0.00390625
        %v524 = vmul.f32 %v418, 0.00390625
        %v525 = vmul.f32 %v421, 0.00390625
        %v526 = vmul.f32 %v424, 0.00390625
        %v527 = vmul.f32 %v427, 0.00390625
        %v528 = vmul.f32 %v430, 0.00390625
        %v529 = vmul.f32 %v433, 0.00390625
        %v530 = vmul.f32 %v468, 0.00390625
        %v531 = vmul.f32 %v471, 0.00390625
        %v532 = vmul.f32 %v474, 0.00390625
        %v533 = vmul.f32 %v477, 0.00390625
        %v534 = vmul.f32 %v480, 0.00390625
        %v535 = vmul.f32 %v483, 0.00390625
        %v536 = vmul.f32 %v486, 0.00390625
        %v537 = vmul.f32 %v489, 0.00390625
        %v538 = vmul.f32 %v492, 0.00390625
        %v539 = vmul.f32 %v495, 0.00390625
        %v540 = vmul.f32 %v498, 0.00390625
        %v541 = vmul.f32 %v501, 0.00390625
        %v542 = vmul.f32 %v504, 0.00390625
        %v543 = vmul.f32 %v507, 0.00390625
        %v544 = vmul.f32 %v510, 0.00390625
        %v545 = vmul.f32 %v513, 0.00390625
        %v546 = vmul.f32 %v514, %v514
        %v547 = vmul.f32 %v515, %v515
        %v548 = vmul.f32 %v516, %v516
        %v549 = vmul.f32 %v517, %v517
        %v550 = vmul.f32 %v518, %v518
        %v551 = vmul.f32 %v519, %v519
        %v552 = vmul.f32 %v520, %v520
        %v553 = vmul.f32 %v521, %v521
        %v554 = vmul.f32 %v522, %v522
        %v555 = vmul.f32 %v523, %v523
        %v556 = vmul.f32 %v524, %v524
        %v557 = vmul.f32 %v525, %v525
        %v558 = vmul.f32 %v526, %v526
        %v559 = vmul.f32 %v527, %v527
        %v560 = vmul.f32 %v528, %v528
        %v561 = vmul.f32 %v529, %v529
        %v562 = vsub.f32 %v530, %v546
        %v563 = vsub.f32 %v531, %v547
        %v564 = vsub.f32 %v532, %v548
        %v565 = vsub.f32 %v533, %v549
        %v566 = vsub.f32 %v534, %v550
        %v567 = vsub.f32 %v535, %v551
        %v568 = vsub.f32 %v536, %v552
        %v569 = vsub.f32 %v537, %v553
        %v570 = vsub.f32 %v538, %v554
        %v571 = vsub.f32 %v539, %v555
        %v572 = vsub.f32 %v540, %v556
        %v573 = vsub.f32 %v541, %v557
        %v574 = vsub.f32 %v542, %v558
        %v575 = vsub.f32 %v543, %v559
        %v576 = vsub.f32 %v544, %v560
        %v577 = vsub.f32 %v545, %v561
        %v578 = vmax.f32 %v562, 0.0
        %v579 = vmax.f32 %v563, 0.0
        %v580 = vmax.f32 %v564, 0.0
        %v581 = vmax.f32 %v565, 0.0
        %v582 = vmax.f32 %v566, 0.0
        %v583 = vmax.f32 %v567, 0.0
        %v584 = vmax.f32 %v568, 0.0
        %v585 = vmax.f32 %v569, 0.0
        %v586 = vmax.f32 %v570, 0.0
        %v587 = vmax.f32 %v571, 0.0
        %v588 = vmax.f32 %v572, 0.0
        %v589 = vmax.f32 %v573, 0.0
        %v590 = vmax.f32 %v574, 0.0
        %v591 = vmax.f32 %v575, 0.0
        %v592 = vmax.f32 %v576, 0.0
        %v593 = vmax.f32 %v577, 0.0
        %v594 = vsub.f32 %v292, %v514
        %v595 = vsub.f32 %v294, %v514
        %v596 = vsub.f32 %v298, %v515
        %v597 = vsub.f32 %v300, %v515
        %v598 = vsub.f32 %v304, %v516
        %v599 = vsub.f32 %v306, %v516
        %v600 = vsub.f32 %v310, %v517
        %v601 = vsub.f32 %v312, %v517
        %v602 = vsub.f32 %v316, %v518
        %v603 = vsub.f32 %v318, %v518
        %v604 = vsub.f32 %v322, %v519
        %v605 = vsub.f32 %v324, %v519
        %v606 = vsub.f32 %v328, %v520
        %v607 = vsub.f32 %v330, %v520
        %v608 = vsub.f32 %v334, %v521
        %v609 = vsub.f32 %v336, %v521
        %v610 = vsub.f32 %v340, %v522
        %v611 = vsub.f32 %v342, %v522
        %v612 = vsub.f32 %v346, %v523
        %v613 = vsub.f32 %v348, %v523
        %v614 = vsub.f32 %v352, %v524
        %v615 = vsub.f32 %v354, %v524
        %v616 = vsub.f32 %v358, %v525
        %v617 = vsub.f32 %v360, %v525
        %v618 = vsub.f32 %v364, %v526
        %v619 = vsub.f32 %v366, %v526
        %v620 = vsub.f32 %v370, %v527
        %v621 = vsub.f32 %v372, %v527
        %v622 = vsub.f32 %v376, %v528
        %v623 = vsub.f32 %v378, %v528
        %v624 = vsub.f32 %v382, %v529
        %v625 = vsub.f32 %v384, %v529
        %v626 = vadd.f32 %v578, 1e-05
        %v627 = vadd.f32 %v579, 1e-05
        %v628 = vadd.f32 %v580, 1e-05
        %v629 = vadd.f32 %v581, 1e-05
        %v630 = vadd.f32 %v582, 1e-05
        %v631 = vadd.f32 %v583, 1e-05
        %v632 = vadd.f32 %v584, 1e-05
        %v633 = vadd.f32 %v585, 1e-05
        %v634 = vadd.f32 %v586, 1e-05
        %v635 = vadd.f32 %v587, 1e-05
        %v636 = vadd.f32 %v588, 1e-05
        %v637 = vadd.f32 %v589, 1e-05
        %v638 = vadd.f32 %v590, 1e-05
        %v639 = vadd.f32 %v591, 1e-05
        %v640 = vadd.f32 %v592, 1e-05
        %v641 = vadd.f32 %v593, 1e-05
        %v642 = vrsqrt.pop %v626
        %v643 = vrsqrt.pop %v627
        %v644 = vrsqrt.pop %v628
        %v645 = vrsqrt.pop %v629
        %v646 = vrsqrt.pop %v630
        %v647 = vrsqrt.pop %v631
        %v648 = vrsqrt.pop %v632
        %v649 = vrsqrt.pop %v633
        %v650 = vrsqrt.pop %v634
        %v651 = vrsqrt.pop %v635
        %v652 = vrsqrt.pop %v636
        %v653 = vrsqrt.pop %v637
        %v654 = vrsqrt.pop %v638
        %v655 = vrsqrt.pop %v639
        %v656 = vrsqrt.pop %v640
        %v657 = vrsqrt.pop %v641
        %v658 = vmul.f32 %v594, %v642
        %v659 = vmul.f32 %v595, %v642
        %v660 = vmul.f32 %v596, %v643
        %v661 = vmul.f32 %v597, %v643
        %v662 = vmul.f32 %v598, %v644
        %v663 = vmul.f32 %v599, %v644
        %v664 = vmul.f32 %v600, %v645
        %v665 = vmul.f32 %v601, %v645
        %v666 = vmul.f32 %v602, %v646
        %v667 = vmul.f32 %v603, %v646
        %v668 = vmul.f32 %v604, %v647
        %v669 = vmul.f32 %v605, %v647
        %v670 = vmul.f32 %v606, %v648
        %v671 = vmul.f32 %v607, %v648
        %v672 = vmul.f32 %v608, %v649
        %v673 = vmul.f32 %v609, %v649
        %v674 = vmul.f32 %v610, %v650
        %v675 = vmul.f32 %v611, %v650
        %v676 = vmul.f32 %v612, %v651
        %v677 = vmul.f32 %v613, %v651
        %v678 = vmul.f32 %v614, %v652
        %v679 = vmul.f32 %v615, %v652
        %v680 = vmul.f32 %v616, %v653
        %v681 = vmul.f32 %v617, %v653
        %v682 = vmul.f32 %v618, %v654
        %v683 = vmul.f32 %v619, %v654
        %v684 = vmul.f32 %v620, %v655
        %v685 = vmul.f32 %v621, %v655
        %v686 = vmul.f32 %v622, %v656
        %v687 = vmul.f32 %v623, %v656
        %v688 = vmul.f32 %v624, %v657
        %v689 = vmul.f32 %v625, %v657
        %690 = vst [vmem:[%s176] sm:$0xff] %v658
        %691 = vst [vmem:[%s176 + $0x8] sm:$0xff] %v659
        %692 = vst [vmem:[%s176 + $0x10] sm:$0xff] %v660
        %693 = vst [vmem:[%s176 + $0x18] sm:$0xff] %v661
        %694 = vst [vmem:[%s176 + $0x20] sm:$0xff] %v662
        %695 = vst [vmem:[%s176 + $0x28] sm:$0xff] %v663
        %696 = vst [vmem:[%s176 + $0x30] sm:$0xff] %v664
        %697 = vst [vmem:[%s176 + $0x38] sm:$0xff] %v665
        %698 = vst [vmem:[%s176 + $0x40] sm:$0xff] %v666
        %699 = vst [vmem:[%s176 + $0x48] sm:$0xff] %v667
        %700 = vst [vmem:[%s176 + $0x50] sm:$0xff] %v668
        %701 = vst [vmem:[%s176 + $0x58] sm:$0xff] %v669
        %702 = vst [vmem:[%s176 + $0x60] sm:$0xff] %v670
        %703 = vst [vmem:[%s176 + $0x68] sm:$0xff] %v671
        %704 = vst [vmem:[%s176 + $0x70] sm:$0xff] %v672
        %705 = vst [vmem:[%s176 + $0x78] sm:$0xff] %v673
        %706 = vst [vmem:[%s176 + $0x80] sm:$0xff] %v674
        %707 = vst [vmem:[%s176 + $0x88] sm:$0xff] %v675
        %708 = vst [vmem:[%s176 + $0x90] sm:$0xff] %v676
        %709 = vst [vmem:[%s176 + $0x98] sm:$0xff] %v677
        %710 = vst [vmem:[%s176 + $0xa0] sm:$0xff] %v678
        %711 = vst [vmem:[%s176 + $0xa8] sm:$0xff] %v679
        %712 = vst [vmem:[%s176 + $0xb0] sm:$0xff] %v680
        %713 = vst [vmem:[%s176 + $0xb8] sm:$0xff] %v681
        %714 = vst [vmem:[%s176 + $0xc0] sm:$0xff] %v682
        %715 = vst [vmem:[%s176 + $0xc8] sm:$0xff] %v683
        %716 = vst [vmem:[%s176 + $0xd0] sm:$0xff] %v684
        %717 = vst [vmem:[%s176 + $0xd8] sm:$0xff] %v685
        %718 = vst [vmem:[%s176 + $0xe0] sm:$0xff] %v686
        %719 = vst [vmem:[%s176 + $0xe8] sm:$0xff] %v687
        %720 = vst [vmem:[%s176 + $0xf0] sm:$0xff] %v688
        %721 = vst [vmem:[%s176 + $0xf8] sm:$0xff] %v689
        %s722 = sand.u32 %s75, 1
        %s723 = scalar_lea.sflag [#allocation4], %s722
        %s724 = sand.u32 %s75, 1
        %s725 = smul.addr %s724, 256
        %s726 = scalar_lea.vmem [#allocation7], %s725
        // Predicated region
        $region37: #{tpu_custom_call.1} parent=27 // pred_check
          %p727 = pneg %p85
        $region38: #{tpu_custom_call.1} parent=27 // pred_check_branch
          %729 = sbr.rel (%p727) target = $region40
        $region39: #{tpu_custom_call.1} parent=27 // pred_region
          %s731 = ssub.s32 4096, 4096
          %732 = vsyncadd %s723, %s731
          %s733 = smul.addr %s20, 32
          %s734 = smul.addr %s733, 128
          %s735 = scalar_lea.hbm %s2, %s734
          %s736 = sshll.u32 %s726, 4
          %s737 = int_to_ptr.vmem [resolvable:$true] %s736
          %742 = dma.vmem_to_hbm [thread:$0]  %s737, 4096, %s735, %s723, 256, 256, 16
        $region40: #{tpu_custom_call.1} parent=27 // pred_fallthru
          _
      $region28: #{tpu_custom_call.1} parent=5 // pred_fallthru
        _
      %p743 = scmp.le.s32.totalorder 2, %s15
      // Predicated region
      $region41: #{tpu_custom_call.1} parent=5 // pred_check
        %p744 = pneg %p743
      $region42: #{tpu_custom_call.1} parent=5 // pred_check_branch
        %746 = sbr.rel (%p744) target = $region44
      $region43: #{tpu_custom_call.1} parent=5 // pred_region
        %s747 = ssub.s32 %s15, 2
        // Predicated region
        $region45: #{tpu_custom_call.1} parent=43 // pred_check
          %p748 = pneg %p91
        $region46: #{tpu_custom_call.1} parent=43 // pred_check_branch
          %750 = sbr.rel (%p748) target = $region48
        $region47: #{tpu_custom_call.1} parent=43 // pred_region
          %s751 = sand.u32 %s76, 1
          %s752 = scalar_lea.sflag [#allocation4], %s751
          %s753 = sand.u32 %s76, 1
          %s754 = smul.addr %s753, 256
          %s755 = scalar_lea.vmem [#allocation7], %s754
          %756 = dma.done %s752, 4096
        $region48: #{tpu_custom_call.1} parent=43 // pred_fallthru
          _
      $region44: #{tpu_custom_call.1} parent=5 // pred_fallthru
        _
    $region6: #{tpu_custom_call.1} parent=1 // loop_footer
      %s19 = sadd.s32 1, %s15
    $region7: #{tpu_custom_call.1} parent=1 // loop_footer_branch
      %14 = sbr.rel target = $region3
    $region8: #{tpu_custom_call.1} parent=1 // loop_exit
      _
    %757 = vsyncpa [#allocation3], 1
    %s758 = scalar_lea.sflag [#allocation3], 1
    %759 = vsyncpa %s758, 1
    %760 = vsyncpa [#allocation6], 1
    %761 = vsyncpa [#allocation4], 1
    %s762 = scalar_lea.sflag [#allocation4], 1
    %763 = vsyncpa %s762, 1

</llo_original>
